<compile_context>
chip_gen: v7x
topology: tpu7x:2x2x1
jax: 0.10.0
libtpu: 0.0.40
codegen_flags: <defaults>
</compile_context>

<pallas_src>
import functools

import jax
import jax.numpy as jnp
from jax.experimental import pallas as pl
from jax.experimental.pallas import tpu as pltpu

LN_EPS = 1e-5  # torch.nn.LayerNorm default


def _auto_vmem_limit_bytes():
    """~75% of physical VMEM (96 MiB on 128 MiB chips, 48 MiB on v7x)."""
    try:
        cap = pltpu.get_tpu_info().vmem_capacity_bytes
    except Exception:
        return None  # fall back to the compiler's default scoped limit
    return min((cap * 3) // 4, 100 * 1024 * 1024)


def transformer_layer_kernel(
    x_ref, ln1g_ref, ln1b_ref, wqkv_ref, wo_ref, bo_ref,
    ln2g_ref, ln2b_ref, w1_ref, b1_ref, w2_ref, b2_ref,
    lnfg_ref, lnfb_ref, o_ref, carry_ref, *, heads, dim_head, eps):
    layer = pl.program_id(1)
    num_layers = pl.num_programs(1)

    bt, n_tok, dim = x_ref.shape
    m = bt * n_tok
    inner = heads * dim_head
    cdt = wqkv_ref.dtype            # compute dtype comes from stored weights

    @pl.when(layer == 0)
    def _init():
        carry_ref[...] = x_ref[...].reshape(m, dim).astype(jnp.float32)

    h = carry_ref[...]              # (Bt*N, D) f32 residual stream

    def layernorm(t, g, b):
        mu = jnp.mean(t, axis=-1, keepdims=True)
        c = t - mu
        var = jnp.mean(c * c, axis=-1, keepdims=True)
        return c * jax.lax.rsqrt(var + eps) * g + b

    # ------------------------- attention sub-block -------------------------
    xn = layernorm(h, ln1g_ref[...], ln1b_ref[...]).astype(cdt)     # (M, D)
    # One dense, lane-wide QKV projection (scale/temperature already folded
    # into the Q columns at parameter-prep time).
    qkv = jnp.dot(xn, wqkv_ref[...],
                  preferred_element_type=jnp.float32)               # (M, 3*inner)
    # Head split: (M, 3*inner) -> (Bt, N, 3H, dh) -> (Bt, 3H, N, dh).
    qkv = qkv.reshape(bt, n_tok, 3 * heads, dim_head)
    qkv = jnp.transpose(qkv, (0, 2, 1, 3))
    q = qkv[:, :heads].reshape(bt * heads, n_tok, dim_head).astype(cdt)
    k = qkv[:, heads:2 * heads].reshape(bt * heads, n_tok, dim_head).astype(cdt)
    v = qkv[:, 2 * heads:].reshape(bt * heads, n_tok, dim_head).astype(cdt)

    # scores (Bt*H, N, N): single head/batch-batched dot.
    s = jax.lax.dot_general(q, k, (((2,), (2,)), ((0,), (0,))),
                            preferred_element_type=jnp.float32)
    s = s - jnp.max(s, axis=-1, keepdims=True)
    p = jnp.exp(s)
    denom = jnp.sum(p, axis=-1, keepdims=True)
    r = pl.reciprocal(denom, approx=True)        # EUP slot (free)
    r = r * (2.0 - denom * r)                    # one Newton step -> ~f32 exact
    p = (p * r).astype(cdt)

    ctx = jax.lax.dot_general(p, v, (((2,), (1,)), ((0,), (0,))),
                              preferred_element_type=jnp.float32)   # (Bt*H, N, dh)
    # Merge heads back to token-major (Bt*N, inner), then ONE dense projection.
    ctx = ctx.reshape(bt, heads, n_tok, dim_head)
    ctx = jnp.transpose(ctx, (0, 2, 1, 3)).reshape(m, inner).astype(cdt)
    attn_out = jnp.dot(ctx, wo_ref[...],
                       preferred_element_type=jnp.float32)          # (M, D)
    h = h + attn_out + bo_ref[...]

    # ------------------------ feed-forward sub-block ------------------------
    xn2 = layernorm(h, ln2g_ref[...], ln2b_ref[...]).astype(cdt)
    hid = jnp.dot(xn2, w1_ref[...],
                  preferred_element_type=jnp.float32) + b1_ref[...]
    hid = jnp.maximum(hid, 0.0).astype(cdt)                         # ReLU
    ffn = jnp.dot(hid, w2_ref[...],
                  preferred_element_type=jnp.float32) + b2_ref[...]
    h = h + ffn

    carry_ref[...] = h

    @pl.when(layer == num_layers - 1)
    def _finalize():
        out = layernorm(h, lnfg_ref[...], lnfb_ref[...])
        o_ref[...] = out.reshape(bt, n_tok, dim).astype(o_ref.dtype)


def prepare_params(layer_params, final_ln, *, heads, dim_head, temperature=1.0,
                   compute_dtype=jnp.bfloat16):
    """One-time conversion of torch-layout weights into the fused, dense layout
    the kernel consumes.  All transposes, the QKV fusion, the scale folding and
    the bf16 weight cast happen here, off the per-forward hot path.
    Matmul weights are stored in `compute_dtype`; biases / LN params stay f32."""
    scale = dim_head ** -0.5
    inner = heads * dim_head

    def convert(p):
        dim = p["w_qkv"].shape[1]
        mlp = p["w1"].shape[0]
        f32 = jnp.float32

        # torch to_qkv weight is (3*inner, D); transpose -> (D, 3*inner) with
        # columns ordered [q_h0..q_hH-1, k_h0.., v_hH-1] (h-major, dh-minor).
        wqkv = jnp.asarray(p["w_qkv"], f32).T
        wqkv = jnp.concatenate(
            [wqkv[:, :inner] * (scale / temperature), wqkv[:, inner:]], axis=1)

        return dict(
            ln1_g=jnp.asarray(p["ln1_g"], f32).reshape(1, dim),
            ln1_b=jnp.asarray(p["ln1_b"], f32).reshape(1, dim),
            w_qkv=wqkv.astype(compute_dtype),                        # (D, 3*inner)
            w_o=jnp.asarray(p["w_out"], f32).T.astype(compute_dtype),  # (inner, D)
            b_o=jnp.asarray(p["b_out"], f32).reshape(1, dim),
            ln2_g=jnp.asarray(p["ln2_g"], f32).reshape(1, dim),
            ln2_b=jnp.asarray(p["ln2_b"], f32).reshape(1, dim),
            w1=jnp.asarray(p["w1"], f32).T.astype(compute_dtype),    # (D, mlp)
            b1=jnp.asarray(p["b1"], f32).reshape(1, mlp),
            w2=jnp.asarray(p["w2"], f32).T.astype(compute_dtype),    # (mlp, D)
            b2=jnp.asarray(p["b2"], f32).reshape(1, dim),
        )

    converted = [convert(p) for p in layer_params]
    stacked = {k: jnp.stack([c[k] for c in converted], axis=0)
               for k in converted[0]}
    gamma_f, beta_f = final_ln
    stacked["lnf_g"] = jnp.asarray(gamma_f, jnp.float32).reshape(1, -1)
    stacked["lnf_b"] = jnp.asarray(beta_f, jnp.float32).reshape(1, -1)
    return stacked


def transformer_forward(x, params, *, heads, dim_head, batch_block=1,
                        vmem_limit_bytes="auto"):
    """x: (B, N, D); params: output of prepare_params.
    batch_block: batch items processed per grid step (amortizes weight DMA);
    size it smaller on v7x (64 MiB VMEM/TC), larger on v5e/v6e."""
    b, n, d = x.shape
    depth = params["w_qkv"].shape[0]
    inner = heads * dim_head
    mlp = params["w1"].shape[-1]
    assert params["w_qkv"].shape[-1] == 3 * inner
    assert b % batch_block == 0, "batch must be divisible by batch_block"
    bt = batch_block

    if vmem_limit_bytes == "auto":
        vmem_limit_bytes = _auto_vmem_limit_bytes()

    kernel = functools.partial(transformer_layer_kernel, heads=heads,
                               dim_head=dim_head, eps=LN_EPS)

    def stacked(*shape):
        # Per-layer parameter stored as (depth, *shape): fetch layer li's slice
        # (leading depth dim squeezed away inside the kernel).
        zeros = (0,) * len(shape)
        return pl.BlockSpec((None,) + shape, lambda bi, li: (li,) + zeros)

    xo_spec = pl.BlockSpec((bt, n, d), lambda bi, li: (bi, 0, 0))
    final_spec = pl.BlockSpec((1, d), lambda bi, li: (0, 0))

    return pl.pallas_call(
        kernel,
        out_shape=jax.ShapeDtypeStruct((b, n, d), x.dtype),
        grid=(b // bt, depth),
        in_specs=[
            xo_spec,                     # x
            stacked(1, d),               # ln1 gamma
            stacked(1, d),               # ln1 beta
            stacked(d, 3 * inner),       # fused Wqkv (scale folded into Q cols)
            stacked(inner, d),           # dense Wo
            stacked(1, d),               # b_out
            stacked(1, d),               # ln2 gamma
            stacked(1, d),               # ln2 beta
            stacked(d, mlp),             # W1 (in, out)
            stacked(1, mlp),             # b1
            stacked(mlp, d),             # W2 (in, out)
            stacked(1, d),               # b2
            final_spec,                  # final LN gamma
            final_spec,                  # final LN beta
        ],
        out_specs=xo_spec,
        scratch_shapes=[pltpu.VMEM((bt * n, d), jnp.float32)],  # residual carry
        compiler_params=pltpu.CompilerParams(
            dimension_semantics=("parallel", "arbitrary"),
            vmem_limit_bytes=vmem_limit_bytes),
    )(x, params["ln1_g"], params["ln1_b"], params["w_qkv"], params["w_o"],
      params["b_o"], params["ln2_g"], params["ln2_b"], params["w1"],
      params["b1"], params["w2"], params["b2"], params["lnf_g"],
      params["lnf_b"])


# ------------------------- pure-JAX reference ---------------------------
def _layernorm_ref(x, g, b, eps=LN_EPS):
    mu = jnp.mean(x, axis=-1, keepdims=True)
    var = jnp.mean((x - mu) ** 2, axis=-1, keepdims=True)
    return (x - mu) / jnp.sqrt(var + eps) * g + b


def transformer_reference(x, layer_params, final_ln, *, heads, dim_head,
                          temperature=1.0):
    """Mirrors the PyTorch Transformer.forward exactly (dropout p=0)."""
    b, n, d = x.shape
    inner = heads * dim_head
    scale = dim_head ** -0.5
    for p in layer_params:
        xn = _layernorm_ref(x, p["ln1_g"], p["ln1_b"])
        qkv = jnp.einsum("bnd,od->bno", xn, p["w_qkv"])
        q, k, v = jnp.split(qkv, 3, axis=-1)

        def to_heads(t):
            return t.reshape(b, n, heads, dim_head).transpose(0, 2, 1, 3)

        q, k, v = map(to_heads, (q, k, v))
        attn = jnp.einsum("bhnd,bhmd->bhnm", q / temperature, k) * scale
        attn = jax.nn.softmax(attn, axis=-1)
        out = jnp.einsum("bhnm,bhmd->bhnd", attn, v)
        out = out.transpose(0, 2, 1, 3).reshape(b, n, inner)
        x = x + jnp.einsum("bni,di->bnd", out, p["w_out"]) + p["b_out"]
        xn2 = _layernorm_ref(x, p["ln2_g"], p["ln2_b"])
        hid = jax.nn.relu(jnp.einsum("bnd,hd->bnh", xn2, p["w1"]) + p["b1"])
        x = x + jnp.einsum("bnh,dh->bnd", hid, p["w2"]) + p["b2"]
    gamma_f, beta_f = final_ln
    return _layernorm_ref(x, gamma_f, beta_f)


if __name__ == "__main__":
    B, N, DIM = 2, 8, 32
    HEADS, DIM_HEAD, MLP_DIM, DEPTH = 4, 8, 64, 2
    INNER = HEADS * DIM_HEAD

    key = jax.random.PRNGKey(0)
    key, kx = jax.random.split(key)
    x = jax.random.normal(kx, (B, N, DIM), dtype=jnp.float32)

    layer_params = []
    for _ in range(DEPTH):
        keys = jax.random.split(key, 13)
        key = keys[0]
        layer_params.append(dict(
            ln1_g=1.0 + 0.1 * jax.random.normal(keys[1], (DIM,), jnp.float32),
            ln1_b=0.1 * jax.random.normal(keys[2], (DIM,), jnp.float32),
            w_qkv=0.1 * jax.random.normal(keys[3], (3 * INNER, DIM), jnp.float32),
            w_out=0.1 * jax.random.normal(keys[4], (DIM, INNER), jnp.float32),
            b_out=0.1 * jax.random.normal(keys[5], (DIM,), jnp.float32),
            ln2_g=1.0 + 0.1 * jax.random.normal(keys[6], (DIM,), jnp.float32),
            ln2_b=0.1 * jax.random.normal(keys[7], (DIM,), jnp.float32),
            w1=0.1 * jax.random.normal(keys[8], (MLP_DIM, DIM), jnp.float32),
            b1=0.1 * jax.random.normal(keys[9], (MLP_DIM,), jnp.float32),
            w2=0.1 * jax.random.normal(keys[10], (DIM, MLP_DIM), jnp.float32),
            b2=0.1 * jax.random.normal(keys[11], (DIM,), jnp.float32),
        ))
    key, kg, kb = jax.random.split(key, 3)
    final_ln = (1.0 + 0.1 * jax.random.normal(kg, (DIM,), jnp.float32),
                0.1 * jax.random.normal(kb, (DIM,), jnp.float32))

    ref = transformer_reference(x, layer_params, final_ln,
                                heads=HEADS, dim_head=DIM_HEAD)

    # f32 weight storage: tight numerical check (approx+Newton reciprocal keeps
    # near-f32 accuracy).  batch_block=1 -> 2 parallel batch grid steps.
    params_f32 = prepare_params(layer_params, final_ln, heads=HEADS,
                                dim_head=DIM_HEAD, compute_dtype=jnp.float32)
    out = transformer_forward(x, params_f32, heads=HEADS, dim_head=DIM_HEAD,
                              batch_block=1)
    out = jax.block_until_ready(out)
    assert out.shape == (B, N, DIM)
    assert jnp.allclose(out, ref, atol=1e-3, rtol=1e-3), float(
        jnp.max(jnp.abs(out - ref)))

    # bf16 weight storage (default / fast path on all generations), with batch
    # blocking so both batch items share one weight stream per layer.
    params_bf16 = prepare_params(layer_params, final_ln, heads=HEADS,
                                 dim_head=DIM_HEAD, compute_dtype=jnp.bfloat16)
    out_bf16 = transformer_forward(x, params_bf16, heads=HEADS,
                                   dim_head=DIM_HEAD, batch_block=2)
    out_bf16 = jax.block_until_ready(out_bf16)
    assert jnp.allclose(out_bf16, ref, atol=5e-2, rtol=5e-2), float(
        jnp.max(jnp.abs(out_bf16 - ref)))

    print("KERNEL_OK")
</pallas_src>

<mosaic_0001>
module attributes {stable_mosaic.version = 11 : i64} {
  func.func @transformer_layer_kernel(%arg0: i32, %arg1: i32, %arg2: memref<1x8x32xf32, #tpu.memory_space<vmem>>, %arg3: memref<1x1x32xf32, #tpu.memory_space<vmem>>, %arg4: memref<1x1x32xf32, #tpu.memory_space<vmem>>, %arg5: memref<1x32x96xf32, #tpu.memory_space<vmem>>, %arg6: memref<1x32x32xf32, #tpu.memory_space<vmem>>, %arg7: memref<1x1x32xf32, #tpu.memory_space<vmem>>, %arg8: memref<1x1x32xf32, #tpu.memory_space<vmem>>, %arg9: memref<1x1x32xf32, #tpu.memory_space<vmem>>, %arg10: memref<1x32x64xf32, #tpu.memory_space<vmem>>, %arg11: memref<1x1x64xf32, #tpu.memory_space<vmem>>, %arg12: memref<1x64x32xf32, #tpu.memory_space<vmem>>, %arg13: memref<1x1x32xf32, #tpu.memory_space<vmem>>, %arg14: memref<1x32xf32, #tpu.memory_space<vmem>>, %arg15: memref<1x32xf32, #tpu.memory_space<vmem>>, %arg16: memref<1x8x32xf32, #tpu.memory_space<vmem>>, %arg17: memref<8x32xf32, #tpu.memory_space<vmem>>) attributes {dimension_semantics = [#tpu.dimension_semantics<parallel>, #tpu.dimension_semantics<arbitrary>], iteration_bounds = array<i64: 2, 2>, scalar_prefetch = 0 : i64, scratch_operands = 1 : i64, tpu.core_type = #tpu.core_type<tc>, window_params = [{transform_indices = @transform_0, window_bounds = array<i64: 1, 8, 32>}, {transform_indices = @transform_1, window_bounds = array<i64: 1, 1, 32>}, {transform_indices = @transform_2, window_bounds = array<i64: 1, 1, 32>}, {transform_indices = @transform_3, window_bounds = array<i64: 1, 32, 96>}, {transform_indices = @transform_4, window_bounds = array<i64: 1, 32, 32>}, {transform_indices = @transform_5, window_bounds = array<i64: 1, 1, 32>}, {transform_indices = @transform_6, window_bounds = array<i64: 1, 1, 32>}, {transform_indices = @transform_7, window_bounds = array<i64: 1, 1, 32>}, {transform_indices = @transform_8, window_bounds = array<i64: 1, 32, 64>}, {transform_indices = @transform_9, window_bounds = array<i64: 1, 1, 64>}, {transform_indices = @transform_10, window_bounds = array<i64: 1, 64, 32>}, {transform_indices = @transform_11, window_bounds = array<i64: 1, 1, 32>}, {pipeline_mode = #tpu.pipeline_mode<synchronous>, transform_indices = @transform_12, window_bounds = array<i64: 1, 32>}, {pipeline_mode = #tpu.pipeline_mode<synchronous>, transform_indices = @transform_13, window_bounds = array<i64: 1, 32>}, {transform_indices = @transform_14, window_bounds = array<i64: 1, 8, 32>}]} {
    %c0_i32 = arith.constant 0 : i32
    %0 = arith.cmpi eq, %arg1, %c0_i32 : i32
    %1 = arith.extui %0 : i1 to i32
    %c0_i32_0 = arith.constant 0 : i32
    %2 = arith.cmpi ne, %1, %c0_i32_0 : i32
    scf.if %2 {
      %c0_57 = arith.constant 0 : index
      %c0_58 = arith.constant 0 : index
      %c0_59 = arith.constant 0 : index
      %111 = vector.load %arg2[%c0_57, %c0_58, %c0_59] : memref<1x8x32xf32, #tpu.memory_space<vmem>>, vector<1x8x32xf32>
      %112 = vector.shape_cast %111 : vector<1x8x32xf32> to vector<8x32xf32>
      %c0_60 = arith.constant 0 : index
      %c0_61 = arith.constant 0 : index
      %113 = vector.load %arg17[%c0_60, %c0_61] : memref<8x32xf32, #tpu.memory_space<vmem>>, vector<8x32xf32>
      tpu.vector_store %arg17[%c0_60, %c0_61], %112 {strides = array<i32>} : memref<8x32xf32, #tpu.memory_space<vmem>>, vector<8x32xf32>,
    } else {
    }
    %c0 = arith.constant 0 : index
    %c0_1 = arith.constant 0 : index
    %3 = vector.load %arg17[%c0, %c0_1] : memref<8x32xf32, #tpu.memory_space<vmem>>, vector<8x32xf32>
    %c0_2 = arith.constant 0 : index
    %c0_3 = arith.constant 0 : index
    %c0_4 = arith.constant 0 : index
    %4 = vector.load %arg3[%c0_2, %c0_3, %c0_4] : memref<1x1x32xf32, #tpu.memory_space<vmem>>, vector<1x1x32xf32>
    %5 = vector.shape_cast %4 : vector<1x1x32xf32> to vector<1x32xf32>
    %c0_5 = arith.constant 0 : index
    %c0_6 = arith.constant 0 : index
    %c0_7 = arith.constant 0 : index
    %6 = vector.load %arg4[%c0_5, %c0_6, %c0_7] : memref<1x1x32xf32, #tpu.memory_space<vmem>>, vector<1x1x32xf32>
    %7 = vector.shape_cast %6 : vector<1x1x32xf32> to vector<1x32xf32>
    %cst = arith.constant dense<0.000000e+00> : vector<8xf32>
    %8 = vector.multi_reduction <add>, %3, %cst [1] : vector<8x32xf32> to vector<8xf32>
    %9 = vector.shape_cast %8 : vector<8xf32> to vector<8x1xf32>
    %cst_8 = arith.constant 3.200000e+01 : f32
    %10 = vector.broadcast %cst_8 : f32 to vector<8x1xf32>
    %11 = arith.divf %9, %10 : vector<8x1xf32>
    %12 = vector.broadcast %11 : vector<8x1xf32> to vector<8x32xf32>
    %13 = arith.subf %3, %12 : vector<8x32xf32>
    %14 = arith.mulf %13, %13 : vector<8x32xf32>
    %cst_9 = arith.constant dense<0.000000e+00> : vector<8xf32>
    %15 = vector.multi_reduction <add>, %14, %cst_9 [1] : vector<8x32xf32> to vector<8xf32>
    %16 = vector.shape_cast %15 : vector<8xf32> to vector<8x1xf32>
    %cst_10 = arith.constant 3.200000e+01 : f32
    %17 = vector.broadcast %cst_10 : f32 to vector<8x1xf32>
    %18 = arith.divf %16, %17 : vector<8x1xf32>
    %cst_11 = arith.constant 9.99999974E-6 : f32
    %19 = vector.broadcast %cst_11 : f32 to vector<8x1xf32>
    %20 = arith.addf %18, %19 : vector<8x1xf32>
    %21 = math.rsqrt %20 : vector<8x1xf32>
    %22 = vector.broadcast %21 : vector<8x1xf32> to vector<8x32xf32>
    %23 = arith.mulf %13, %22 : vector<8x32xf32>
    %24 = vector.broadcast %5 : vector<1x32xf32> to vector<8x32xf32>
    %25 = arith.mulf %23, %24 : vector<8x32xf32>
    %26 = vector.broadcast %7 : vector<1x32xf32> to vector<8x32xf32>
    %27 = arith.addf %25, %26 : vector<8x32xf32>
    %c0_12 = arith.constant 0 : index
    %c0_13 = arith.constant 0 : index
    %c0_14 = arith.constant 0 : index
    %28 = vector.load %arg5[%c0_12, %c0_13, %c0_14] : memref<1x32x96xf32, #tpu.memory_space<vmem>>, vector<1x32x96xf32>
    %29 = vector.shape_cast %28 : vector<1x32x96xf32> to vector<32x96xf32>
    %cst_15 = arith.constant dense<0.000000e+00> : vector<8x96xf32>
    %30 = tpu.matmul %27, %29, %cst_15 {dimension_numbers = #tpu.dot_dimension_numbers<[1], [0], [0], [1], [0, 0, 1, 1], [], []>} : vector<8x32xf32>, vector<32x96xf32>, vector<8x96xf32> -> vector<8x96xf32>
    %31 = vector.shape_cast %30 : vector<8x96xf32> to vector<1x8x12x8xf32>
    %32 = tpu.transpose %31, [0, 2, 1, 3] : vector<1x8x12x8xf32> -> vector<1x12x8x8xf32>
    %33 = vector.extract_strided_slice %32 {offsets = [0, 0, 0, 0], sizes = [1, 4, 8, 8], strides = [1, 1, 1, 1]} : vector<1x12x8x8xf32> to vector<1x4x8x8xf32>
    %34 = vector.shape_cast %33 : vector<1x4x8x8xf32> to vector<4x8x8xf32>
    %35 = vector.extract_strided_slice %32 {offsets = [0, 4, 0, 0], sizes = [1, 4, 8, 8], strides = [1, 1, 1, 1]} : vector<1x12x8x8xf32> to vector<1x4x8x8xf32>
    %36 = vector.shape_cast %35 : vector<1x4x8x8xf32> to vector<4x8x8xf32>
    %37 = vector.extract_strided_slice %32 {offsets = [0, 8, 0, 0], sizes = [1, 4, 8, 8], strides = [1, 1, 1, 1]} : vector<1x12x8x8xf32> to vector<1x4x8x8xf32>
    %38 = vector.shape_cast %37 : vector<1x4x8x8xf32> to vector<4x8x8xf32>
    %cst_16 = arith.constant dense<0.000000e+00> : vector<4x8x8xf32>
    %39 = tpu.matmul %34, %36, %cst_16 {dimension_numbers = #tpu.dot_dimension_numbers<[2], [2], [1], [1], [0, 0, 0, 1, 1, 1], [0], [0]>} : vector<4x8x8xf32>, vector<4x8x8xf32>, vector<4x8x8xf32> -> vector<4x8x8xf32>
    %cst_17 = arith.constant dense<0xFF800000> : vector<4x8xf32>
    %40 = vector.multi_reduction <maximumf>, %39, %cst_17 [2] : vector<4x8x8xf32> to vector<4x8xf32>
    %41 = vector.shape_cast %40 : vector<4x8xf32> to vector<4x8x1xf32>
    %42 = vector.broadcast %41 : vector<4x8x1xf32> to vector<4x8x8xf32>
    %43 = arith.subf %39, %42 : vector<4x8x8xf32>
    %44 = math.exp %43 : vector<4x8x8xf32>
    %cst_18 = arith.constant dense<0.000000e+00> : vector<4x8xf32>
    %45 = vector.multi_reduction <add>, %44, %cst_18 [2] : vector<4x8x8xf32> to vector<4x8xf32>
    %46 = vector.shape_cast %45 : vector<4x8xf32> to vector<4x8x1xf32>
    %47 = tpu.reciprocal %46 {approx = true} : vector<4x8x1xf32> -> vector<4x8x1xf32>
    %48 = arith.mulf %46, %47 : vector<4x8x1xf32>
    %cst_19 = arith.constant 2.000000e+00 : f32
    %49 = vector.broadcast %cst_19 : f32 to vector<4x8x1xf32>
    %50 = arith.subf %49, %48 : vector<4x8x1xf32>
    %51 = arith.mulf %47, %50 : vector<4x8x1xf32>
    %52 = vector.broadcast %51 : vector<4x8x1xf32> to vector<4x8x8xf32>
    %53 = arith.mulf %44, %52 : vector<4x8x8xf32>
    %cst_20 = arith.constant dense<0.000000e+00> : vector<4x8x8xf32>
    %54 = tpu.matmul %53, %38, %cst_20 {dimension_numbers = #tpu.dot_dimension_numbers<[2], [1], [1], [2], [0, 0, 0, 1, 1, 2], [0], [0]>} : vector<4x8x8xf32>, vector<4x8x8xf32>, vector<4x8x8xf32> -> vector<4x8x8xf32>
    %55 = vector.shape_cast %54 : vector<4x8x8xf32> to vector<1x4x8x8xf32>
    %56 = tpu.transpose %55, [0, 2, 1, 3] : vector<1x4x8x8xf32> -> vector<1x8x4x8xf32>
    %57 = vector.shape_cast %56 : vector<1x8x4x8xf32> to vector<8x32xf32>
    %c0_21 = arith.constant 0 : index
    %c0_22 = arith.constant 0 : index
    %c0_23 = arith.constant 0 : index
    %58 = vector.load %arg6[%c0_21, %c0_22, %c0_23] : memref<1x32x32xf32, #tpu.memory_space<vmem>>, vector<1x32x32xf32>
    %59 = vector.shape_cast %58 : vector<1x32x32xf32> to vector<32x32xf32>
    %cst_24 = arith.constant dense<0.000000e+00> : vector<8x32xf32>
    %60 = tpu.matmul %57, %59, %cst_24 {dimension_numbers = #tpu.dot_dimension_numbers<[1], [0], [0], [1], [0, 0, 1, 1], [], []>} : vector<8x32xf32>, vector<32x32xf32>, vector<8x32xf32> -> vector<8x32xf32>
    %61 = arith.addf %3, %60 : vector<8x32xf32>
    %c0_25 = arith.constant 0 : index
    %c0_26 = arith.constant 0 : index
    %c0_27 = arith.constant 0 : index
    %62 = vector.load %arg7[%c0_25, %c0_26, %c0_27] : memref<1x1x32xf32, #tpu.memory_space<vmem>>, vector<1x1x32xf32>
    %63 = vector.shape_cast %62 : vector<1x1x32xf32> to vector<1x32xf32>
    %64 = vector.broadcast %63 : vector<1x32xf32> to vector<8x32xf32>
    %65 = arith.addf %61, %64 : vector<8x32xf32>
    %c0_28 = arith.constant 0 : index
    %c0_29 = arith.constant 0 : index
    %c0_30 = arith.constant 0 : index
    %66 = vector.load %arg8[%c0_28, %c0_29, %c0_30] : memref<1x1x32xf32, #tpu.memory_space<vmem>>, vector<1x1x32xf32>
    %67 = vector.shape_cast %66 : vector<1x1x32xf32> to vector<1x32xf32>
    %c0_31 = arith.constant 0 : index
    %c0_32 = arith.constant 0 : index
    %c0_33 = arith.constant 0 : index
    %68 = vector.load %arg9[%c0_31, %c0_32, %c0_33] : memref<1x1x32xf32, #tpu.memory_space<vmem>>, vector<1x1x32xf32>
    %69 = vector.shape_cast %68 : vector<1x1x32xf32> to vector<1x32xf32>
    %cst_34 = arith.constant dense<0.000000e+00> : vector<8xf32>
    %70 = vector.multi_reduction <add>, %65, %cst_34 [1] : vector<8x32xf32> to vector<8xf32>
    %71 = vector.shape_cast %70 : vector<8xf32> to vector<8x1xf32>
    %cst_35 = arith.constant 3.200000e+01 : f32
    %72 = vector.broadcast %cst_35 : f32 to vector<8x1xf32>
    %73 = arith.divf %71, %72 : vector<8x1xf32>
    %74 = vector.broadcast %73 : vector<8x1xf32> to vector<8x32xf32>
    %75 = arith.subf %65, %74 : vector<8x32xf32>
    %76 = arith.mulf %75, %75 : vector<8x32xf32>
    %cst_36 = arith.constant dense<0.000000e+00> : vector<8xf32>
    %77 = vector.multi_reduction <add>, %76, %cst_36 [1] : vector<8x32xf32> to vector<8xf32>
    %78 = vector.shape_cast %77 : vector<8xf32> to vector<8x1xf32>
    %cst_37 = arith.constant 3.200000e+01 : f32
    %79 = vector.broadcast %cst_37 : f32 to vector<8x1xf32>
    %80 = arith.divf %78, %79 : vector<8x1xf32>
    %cst_38 = arith.constant 9.99999974E-6 : f32
    %81 = vector.broadcast %cst_38 : f32 to vector<8x1xf32>
    %82 = arith.addf %80, %81 : vector<8x1xf32>
    %83 = math.rsqrt %82 : vector<8x1xf32>
    %84 = vector.broadcast %83 : vector<8x1xf32> to vector<8x32xf32>
    %85 = arith.mulf %75, %84 : vector<8x32xf32>
    %86 = vector.broadcast %67 : vector<1x32xf32> to vector<8x32xf32>
    %87 = arith.mulf %85, %86 : vector<8x32xf32>
    %88 = vector.broadcast %69 : vector<1x32xf32> to vector<8x32xf32>
    %89 = arith.addf %87, %88 : vector<8x32xf32>
    %c0_39 = arith.constant 0 : index
    %c0_40 = arith.constant 0 : index
    %c0_41 = arith.constant 0 : index
    %90 = vector.load %arg10[%c0_39, %c0_40, %c0_41] : memref<1x32x64xf32, #tpu.memory_space<vmem>>, vector<1x32x64xf32>
    %91 = vector.shape_cast %90 : vector<1x32x64xf32> to vector<32x64xf32>
    %cst_42 = arith.constant dense<0.000000e+00> : vector<8x64xf32>
    %92 = tpu.matmul %89, %91, %cst_42 {dimension_numbers = #tpu.dot_dimension_numbers<[1], [0], [0], [1], [0, 0, 1, 1], [], []>} : vector<8x32xf32>, vector<32x64xf32>, vector<8x64xf32> -> vector<8x64xf32>
    %c0_43 = arith.constant 0 : index
    %c0_44 = arith.constant 0 : index
    %c0_45 = arith.constant 0 : index
    %93 = vector.load %arg11[%c0_43, %c0_44, %c0_45] : memref<1x1x64xf32, #tpu.memory_space<vmem>>, vector<1x1x64xf32>
    %94 = vector.shape_cast %93 : vector<1x1x64xf32> to vector<1x64xf32>
    %95 = vector.broadcast %94 : vector<1x64xf32> to vector<8x64xf32>
    %96 = arith.addf %92, %95 : vector<8x64xf32>
    %cst_46 = arith.constant 0.000000e+00 : f32
    %97 = vector.broadcast %cst_46 : f32 to vector<8x64xf32>
    %98 = arith.maximumf %96, %97 : vector<8x64xf32>
    %c0_47 = arith.constant 0 : index
    %c0_48 = arith.constant 0 : index
    %c0_49 = arith.constant 0 : index
    %99 = vector.load %arg12[%c0_47, %c0_48, %c0_49] : memref<1x64x32xf32, #tpu.memory_space<vmem>>, vector<1x64x32xf32>
    %100 = vector.shape_cast %99 : vector<1x64x32xf32> to vector<64x32xf32>
    %cst_50 = arith.constant dense<0.000000e+00> : vector<8x32xf32>
    %101 = tpu.matmul %98, %100, %cst_50 {dimension_numbers = #tpu.dot_dimension_numbers<[1], [0], [0], [1], [0, 0, 1, 1], [], []>} : vector<8x64xf32>, vector<64x32xf32>, vector<8x32xf32> -> vector<8x32xf32>
    %c0_51 = arith.constant 0 : index
    %c0_52 = arith.constant 0 : index
    %c0_53 = arith.constant 0 : index
    %102 = vector.load %arg13[%c0_51, %c0_52, %c0_53] : memref<1x1x32xf32, #tpu.memory_space<vmem>>, vector<1x1x32xf32>
    %103 = vector.shape_cast %102 : vector<1x1x32xf32> to vector<1x32xf32>
    %104 = vector.broadcast %103 : vector<1x32xf32> to vector<8x32xf32>
    %105 = arith.addf %101, %104 : vector<8x32xf32>
    %106 = arith.addf %65, %105 : vector<8x32xf32>
    %c0_54 = arith.constant 0 : index
    %c0_55 = arith.constant 0 : index
    %107 = vector.load %arg17[%c0_54, %c0_55] : memref<8x32xf32, #tpu.memory_space<vmem>>, vector<8x32xf32>
    tpu.vector_store %arg17[%c0_54, %c0_55], %106 {strides = array<i32>} : memref<8x32xf32, #tpu.memory_space<vmem>>, vector<8x32xf32>,
    %c1_i32 = arith.constant 1 : i32
    %108 = arith.cmpi eq, %arg1, %c1_i32 : i32
    %109 = arith.extui %108 : i1 to i32
    %c0_i32_56 = arith.constant 0 : i32
    %110 = arith.cmpi ne, %109, %c0_i32_56 : i32
    scf.if %110 {
      %c0_57 = arith.constant 0 : index
      %c0_58 = arith.constant 0 : index
      %111 = vector.load %arg14[%c0_57, %c0_58] : memref<1x32xf32, #tpu.memory_space<vmem>>, vector<1x32xf32>
      %c0_59 = arith.constant 0 : index
      %c0_60 = arith.constant 0 : index
      %112 = vector.load %arg15[%c0_59, %c0_60] : memref<1x32xf32, #tpu.memory_space<vmem>>, vector<1x32xf32>
      %cst_61 = arith.constant dense<0.000000e+00> : vector<8xf32>
      %113 = vector.multi_reduction <add>, %106, %cst_61 [1] : vector<8x32xf32> to vector<8xf32>
      %114 = vector.shape_cast %113 : vector<8xf32> to vector<8x1xf32>
      %cst_62 = arith.constant 3.200000e+01 : f32
      %115 = vector.broadcast %cst_62 : f32 to vector<8x1xf32>
      %116 = arith.divf %114, %115 : vector<8x1xf32>
      %117 = vector.broadcast %116 : vector<8x1xf32> to vector<8x32xf32>
      %118 = arith.subf %106, %117 : vector<8x32xf32>
      %119 = arith.mulf %118, %118 : vector<8x32xf32>
      %cst_63 = arith.constant dense<0.000000e+00> : vector<8xf32>
      %120 = vector.multi_reduction <add>, %119, %cst_63 [1] : vector<8x32xf32> to vector<8xf32>
      %121 = vector.shape_cast %120 : vector<8xf32> to vector<8x1xf32>
      %cst_64 = arith.constant 3.200000e+01 : f32
      %122 = vector.broadcast %cst_64 : f32 to vector<8x1xf32>
      %123 = arith.divf %121, %122 : vector<8x1xf32>
      %cst_65 = arith.constant 9.99999974E-6 : f32
      %124 = vector.broadcast %cst_65 : f32 to vector<8x1xf32>
      %125 = arith.addf %123, %124 : vector<8x1xf32>
      %126 = math.rsqrt %125 : vector<8x1xf32>
      %127 = vector.broadcast %126 : vector<8x1xf32> to vector<8x32xf32>
      %128 = arith.mulf %118, %127 : vector<8x32xf32>
      %129 = vector.broadcast %111 : vector<1x32xf32> to vector<8x32xf32>
      %130 = arith.mulf %128, %129 : vector<8x32xf32>
      %131 = vector.broadcast %112 : vector<1x32xf32> to vector<8x32xf32>
      %132 = arith.addf %130, %131 : vector<8x32xf32>
      %133 = vector.shape_cast %132 : vector<8x32xf32> to vector<1x8x32xf32>
      %c0_66 = arith.constant 0 : index
      %c0_67 = arith.constant 0 : index
      %c0_68 = arith.constant 0 : index
      %134 = vector.load %arg16[%c0_66, %c0_67, %c0_68] : memref<1x8x32xf32, #tpu.memory_space<vmem>>, vector<1x8x32xf32>
      tpu.vector_store %arg16[%c0_66, %c0_67, %c0_68], %133 {strides = array<i32>} : memref<1x8x32xf32, #tpu.memory_space<vmem>>, vector<1x8x32xf32>,
    } else {
    }
    return
  }
  func.func @transform_0(%arg0: i32, %arg1: i32) -> (i32, i32, i32) {
    %c0_i32 = arith.constant 0 : i32
    %c0_i32_0 = arith.constant 0 : i32
    %c0_i32_1 = arith.constant 0 : i32
    return %arg0, %c0_i32, %c0_i32_0 : i32, i32, i32
  }
  func.func @transform_1(%arg0: i32, %arg1: i32) -> (i32, i32, i32) {
    %c0_i32 = arith.constant 0 : i32
    %c0_i32_0 = arith.constant 0 : i32
    %c0_i32_1 = arith.constant 0 : i32
    return %arg1, %c0_i32, %c0_i32_0 : i32, i32, i32
  }
  func.func @transform_2(%arg0: i32, %arg1: i32) -> (i32, i32, i32) {
    %c0_i32 = arith.constant 0 : i32
    %c0_i32_0 = arith.constant 0 : i32
    %c0_i32_1 = arith.constant 0 : i32
    return %arg1, %c0_i32, %c0_i32_0 : i32, i32, i32
  }
  func.func @transform_3(%arg0: i32, %arg1: i32) -> (i32, i32, i32) {
    %c0_i32 = arith.constant 0 : i32
    %c0_i32_0 = arith.constant 0 : i32
    %c0_i32_1 = arith.constant 0 : i32
    return %arg1, %c0_i32, %c0_i32_0 : i32, i32, i32
  }
  func.func @transform_4(%arg0: i32, %arg1: i32) -> (i32, i32, i32) {
    %c0_i32 = arith.constant 0 : i32
    %c0_i32_0 = arith.constant 0 : i32
    %c0_i32_1 = arith.constant 0 : i32
    return %arg1, %c0_i32, %c0_i32_0 : i32, i32, i32
  }
  func.func @transform_5(%arg0: i32, %arg1: i32) -> (i32, i32, i32) {
    %c0_i32 = arith.constant 0 : i32
    %c0_i32_0 = arith.constant 0 : i32
    %c0_i32_1 = arith.constant 0 : i32
    return %arg1, %c0_i32, %c0_i32_0 : i32, i32, i32
  }
  func.func @transform_6(%arg0: i32, %arg1: i32) -> (i32, i32, i32) {
    %c0_i32 = arith.constant 0 : i32
    %c0_i32_0 = arith.constant 0 : i32
    %c0_i32_1 = arith.constant 0 : i32
    return %arg1, %c0_i32, %c0_i32_0 : i32, i32, i32
  }
  func.func @transform_7(%arg0: i32, %arg1: i32) -> (i32, i32, i32) {
    %c0_i32 = arith.constant 0 : i32
    %c0_i32_0 = arith.constant 0 : i32
    %c0_i32_1 = arith.constant 0 : i32
    return %arg1, %c0_i32, %c0_i32_0 : i32, i32, i32
  }
  func.func @transform_8(%arg0: i32, %arg1: i32) -> (i32, i32, i32) {
    %c0_i32 = arith.constant 0 : i32
    %c0_i32_0 = arith.constant 0 : i32
    %c0_i32_1 = arith.constant 0 : i32
    return %arg1, %c0_i32, %c0_i32_0 : i32, i32, i32
  }
  func.func @transform_9(%arg0: i32, %arg1: i32) -> (i32, i32, i32) {
    %c0_i32 = arith.constant 0 : i32
    %c0_i32_0 = arith.constant 0 : i32
    %c0_i32_1 = arith.constant 0 : i32
    return %arg1, %c0_i32, %c0_i32_0 : i32, i32, i32
  }
  func.func @transform_10(%arg0: i32, %arg1: i32) -> (i32, i32, i32) {
    %c0_i32 = arith.constant 0 : i32
    %c0_i32_0 = arith.constant 0 : i32
    %c0_i32_1 = arith.constant 0 : i32
    return %arg1, %c0_i32, %c0_i32_0 : i32, i32, i32
  }
  func.func @transform_11(%arg0: i32, %arg1: i32) -> (i32, i32, i32) {
    %c0_i32 = arith.constant 0 : i32
    %c0_i32_0 = arith.constant 0 : i32
    %c0_i32_1 = arith.constant 0 : i32
    return %arg1, %c0_i32, %c0_i32_0 : i32, i32, i32
  }
  func.func @transform_12(%arg0: i32, %arg1: i32) -> (i32, i32) {
    %c0_i32 = arith.constant 0 : i32
    %c0_i32_0 = arith.constant 0 : i32
    %c0_i32_1 = arith.constant 0 : i32
    return %c0_i32, %c0_i32_0 : i32, i32
  }
  func.func @transform_13(%arg0: i32, %arg1: i32) -> (i32, i32) {
    %c0_i32 = arith.constant 0 : i32
    %c0_i32_0 = arith.constant 0 : i32
    %c0_i32_1 = arith.constant 0 : i32
    return %c0_i32, %c0_i32_0 : i32, i32
  }
  func.func @transform_14(%arg0: i32, %arg1: i32) -> (i32, i32, i32) {
    %c0_i32 = arith.constant 0 : i32
    %c0_i32_0 = arith.constant 0 : i32
    %c0_i32_1 = arith.constant 0 : i32
    return %arg0, %c0_i32, %c0_i32_0 : i32, i32, i32
  }
}

</mosaic_0001>

<llo_original>
// kernel: tpu_custom_call.1
$region0: #{tpu_custom_call.1}
  #allocation0 [shape = 'u32[]', space=smem, size = 0x4, offset = 0x4, fixed_abs, tag = 'smem constant byte address 0x4 - core index']
  #allocation1 [shape = 'u32[144,128]{1,0:T(1,128)}', space=vmem, size = 0x12000, scoped, tag = 'internal scratch']
  #allocation2 [shape = 'f32[8,32]{1,0:T(8,128)}', space=vmem, size = 0x1000, scoped, tag = 'scratch operand']
  %s0 = inlined_call_operand.hbm [shape: f32[2,8,32], index: 0, kind: input, shape index: {}]
  %s1 = inlined_call_operand.vmem [shape: f32[2,1,32], index: 1, kind: input, shape index: {}]
  %s2 = inlined_call_operand.vmem [shape: f32[2,1,32], index: 2, kind: input, shape index: {}]
  %s3 = inlined_call_operand.vmem [shape: f32[2,32,96], index: 3, kind: input, shape index: {}]
  %s4 = inlined_call_operand.vmem [shape: f32[2,32,32], index: 4, kind: input, shape index: {}]
  %s5 = inlined_call_operand.vmem [shape: f32[2,1,32], index: 5, kind: input, shape index: {}]
  %s6 = inlined_call_operand.vmem [shape: f32[2,1,32], index: 6, kind: input, shape index: {}]
  %s7 = inlined_call_operand.vmem [shape: f32[2,1,32], index: 7, kind: input, shape index: {}]
  %s8 = inlined_call_operand.vmem [shape: f32[2,32,64], index: 8, kind: input, shape index: {}]
  %s9 = inlined_call_operand.vmem [shape: f32[2,1,64], index: 9, kind: input, shape index: {}]
  %s10 = inlined_call_operand.vmem [shape: f32[2,64,32], index: 10, kind: input, shape index: {}]
  %s11 = inlined_call_operand.vmem [shape: f32[2,1,32], index: 11, kind: input, shape index: {}]
  %s12 = inlined_call_operand.vmem [shape: f32[1,32], index: 12, kind: input, shape index: {}]
  %s13 = inlined_call_operand.vmem [shape: f32[1,32], index: 13, kind: input, shape index: {}]
  %s14 = inlined_call_operand.hbm [shape: f32[2,8,32], index: 14, kind: output, shape index: {}]
  %s15 = sld [smem:[#allocation0]]
  $region101: #{tpu_custom_call.1} parent=0
    _
  %s17 = ssub.s32 1, %s15
  %s18 = scalar_select 0, %s17, %s15
  $region1: #{tpu_custom_call.1} parent=0
    #allocation3 [shape = 'u8[8192]{0}', space=vmem, size = 0x2000, scoped, tag = 'input window, operand 0']
    #allocation4 [shape = 's32[2]{0}', space=sflag, size = 0x8, scoped, tag = 'scoped memory for tpu_custom_call.1']
    #allocation5 [shape = 's32[2]{0}', space=sflag, size = 0x8, scoped, tag = 'scoped memory for tpu_custom_call.1']
    #allocation6 [shape = 'u8[8192]{0}', space=vmem, size = 0x2000, scoped, tag = 'output window, operand 0']
    %19 = vsyncpa [#allocation4], 0
    %s20 = scalar_lea.sflag [#allocation4], 1
    %21 = vsyncpa %s20, 0
    %22 = vsyncpa [#allocation5], 0
    %s23 = scalar_lea.sflag [#allocation5], 1
    %24 = vsyncpa %s23, 0
    loop: start=0, step=1, limit=6
    $region2: #{tpu_custom_call.1} parent=1 // loop_pre_header
      _
    $region3: #{tpu_custom_call.1} parent=1 // loop_header
      %s26 = sphi 0, %s30
      %p27 = scmp.ge.s32.totalorder %s26, 6
      %s33 = sphi 0, %s45
      %s34 = sphi 0, %s41
      %s35 = sphi 0, %s33
      %s36 = sphi 0, %s34
      %s37 = sphi 0, %s35
      %s38 = sphi 0, %s36
      %s48 = sphi 0, %s50
      %s51 = sphi 0, %s48
      %s52 = sphi 0, %s51
      %s68 = sphi 0, %s52
      %s74 = sphi 0, %s76
      %s77 = sphi 0, %s74
      %s78 = sphi 0, %s77
      %s94 = sphi 0, %s78
      %s100 = sphi 0, %s102
      %s103 = sphi 0, %s100
      %s104 = sphi 0, %s103
      %s120 = sphi 0, %s104
      %s126 = sphi 0, %s128
      %s129 = sphi 0, %s126
      %s130 = sphi 0, %s129
      %s146 = sphi 0, %s130
      %s152 = sphi 0, %s154
      %s155 = sphi 0, %s152
      %s156 = sphi 0, %s155
      %s172 = sphi 0, %s156
      %s178 = sphi 0, %s180
      %s181 = sphi 0, %s178
      %s182 = sphi 0, %s181
      %s198 = sphi 0, %s182
      %s204 = sphi 0, %s206
      %s207 = sphi 0, %s204
      %s208 = sphi 0, %s207
      %s224 = sphi 0, %s208
      %s230 = sphi 0, %s232
      %s233 = sphi 0, %s230
      %s234 = sphi 0, %s233
      %s250 = sphi 0, %s234
      %s256 = sphi 0, %s258
      %s259 = sphi 0, %s256
      %s260 = sphi 0, %s259
      %s276 = sphi 0, %s260
      %s282 = sphi 0, %s284
      %s285 = sphi 0, %s282
      %s286 = sphi 0, %s285
      %s302 = sphi 0, %s286
      %s308 = sphi 0, %s310
      %s311 = sphi 0, %s308
      %s312 = sphi 0, %s311
      %s328 = sphi 0, %s312
      %s334 = sphi 0, %s336
      %s337 = sphi 0, %s334
      %s338 = sphi 0, %s337
      %s354 = sphi 0, %s338
      %s358 = sphi 0, %s358
      %s360 = sphi 0, %s358
      %s361 = sphi 0, %s360
      %s375 = sphi 0, %s361
      %s379 = sphi 0, %s379
      %s381 = sphi 0, %s379
      %s382 = sphi 0, %s381
      %s396 = sphi 0, %s382
      %s402 = sphi 0, %s404
      %s405 = sphi 0, %s402
      %s406 = sphi 0, %s405
      %s422 = sphi 0, %s406
    $region4: #{tpu_custom_call.1} parent=1 // loop_header_branch
      %29 = sbr.rel (%p27) target = $region8
    $region5: #{tpu_custom_call.1} parent=1 // loop_body
      %s31 = ssub.s32 %s26, 1
      %s32 = ssub.s32 %s26, 2
      %s39 = sadd.s32 1, %s34
      %p40 = scmp.ge.s32.totalorder %s39, 2
      %s41 = scalar_select %p40, 0, %s39
      %s42 = sadd.s32 1, %s33
      %s43 = scalar_select %p40, %s42, %s33
      %p44 = scmp.ge.s32.totalorder %s43, 2
      %s45 = scalar_select %p44, 0, %s43
      %s46 = ssub.s32 %s33, %s45
      %p47 = scmp.eq.s32.totalorder %s46, 0
      %s49 = sadd.s32 %s48, 1
      %s50 = scalar_select %p47, %s48, %s49
      %p53 = pneg %p47
      %p54 = scmp.eq.s32.totalorder %s26, 3
      %p55 = por %p53, %p54
      %p56 = scmp.ne.s32.totalorder %s48, %s51
      %p57 = scmp.eq.s32.totalorder %s26, 0
      %p58 = por %p56, %p57
      %p59 = scmp.ne.s32.totalorder %s48, %s51
      %p60 = scmp.eq.s32.totalorder %s31, 3
      %p61 = por %p59, %p60
      %p62 = scmp.ne.s32.totalorder %s51, %s52
      %p63 = scmp.eq.s32.totalorder %s31, 0
      %p64 = por %p62, %p63
      %p65 = scmp.ne.s32.totalorder %s51, %s52
      %p66 = scmp.eq.s32.totalorder %s32, 3
      %p67 = por %p65, %p66
      %p69 = scmp.ne.s32.totalorder %s52, %s68
      %p70 = scmp.eq.s32.totalorder %s32, 0
      %p71 = por %p69, %p70
      %s72 = ssub.s32 %s34, %s41
      %p73 = scmp.eq.s32.totalorder %s72, 0
      %s75 = sadd.s32 %s74, 1
      %s76 = scalar_select %p73, %s74, %s75
      %p79 = pneg %p73
      %p80 = scmp.eq.s32.totalorder %s26, 3
      %p81 = por %p79, %p80
      %p82 = scmp.ne.s32.totalorder %s74, %s77
      %p83 = scmp.eq.s32.totalorder %s26, 0
      %p84 = por %p82, %p83
      %p85 = scmp.ne.s32.totalorder %s74, %s77
      %p86 = scmp.eq.s32.totalorder %s31, 3
      %p87 = por %p85, %p86
      %p88 = scmp.ne.s32.totalorder %s77, %s78
      %p89 = scmp.eq.s32.totalorder %s31, 0
      %p90 = por %p88, %p89
      %p91 = scmp.ne.s32.totalorder %s77, %s78
      %p92 = scmp.eq.s32.totalorder %s32, 3
      %p93 = por %p91, %p92
      %p95 = scmp.ne.s32.totalorder %s78, %s94
      %p96 = scmp.eq.s32.totalorder %s32, 0
      %p97 = por %p95, %p96
      %s98 = ssub.s32 %s34, %s41
      %p99 = scmp.eq.s32.totalorder %s98, 0
      %s101 = sadd.s32 %s100, 1
      %s102 = scalar_select %p99, %s100, %s101
      %p105 = pneg %p99
      %p106 = scmp.eq.s32.totalorder %s26, 3
      %p107 = por %p105, %p106
      %p108 = scmp.ne.s32.totalorder %s100, %s103
      %p109 = scmp.eq.s32.totalorder %s26, 0
      %p110 = por %p108, %p109
      %p111 = scmp.ne.s32.totalorder %s100, %s103
      %p112 = scmp.eq.s32.totalorder %s31, 3
      %p113 = por %p111, %p112
      %p114 = scmp.ne.s32.totalorder %s103, %s104
      %p115 = scmp.eq.s32.totalorder %s31, 0
      %p116 = por %p114, %p115
      %p117 = scmp.ne.s32.totalorder %s103, %s104
      %p118 = scmp.eq.s32.totalorder %s32, 3
      %p119 = por %p117, %p118
      %p121 = scmp.ne.s32.totalorder %s104, %s120
      %p122 = scmp.eq.s32.totalorder %s32, 0
      %p123 = por %p121, %p122
      %s124 = ssub.s32 %s34, %s41
      %p125 = scmp.eq.s32.totalorder %s124, 0
      %s127 = sadd.s32 %s126, 1
      %s128 = scalar_select %p125, %s126, %s127
      %p131 = pneg %p125
      %p132 = scmp.eq.s32.totalorder %s26, 3
      %p133 = por %p131, %p132
      %p134 = scmp.ne.s32.totalorder %s126, %s129
      %p135 = scmp.eq.s32.totalorder %s26, 0
      %p136 = por %p134, %p135
      %p137 = scmp.ne.s32.totalorder %s126, %s129
      %p138 = scmp.eq.s32.totalorder %s31, 3
      %p139 = por %p137, %p138
      %p140 = scmp.ne.s32.totalorder %s129, %s130
      %p141 = scmp.eq.s32.totalorder %s31, 0
      %p142 = por %p140, %p141
      %p143 = scmp.ne.s32.totalorder %s129, %s130
      %p144 = scmp.eq.s32.totalorder %s32, 3
      %p145 = por %p143, %p144
      %p147 = scmp.ne.s32.totalorder %s130, %s146
      %p148 = scmp.eq.s32.totalorder %s32, 0
      %p149 = por %p147, %p148
      %s150 = ssub.s32 %s34, %s41
      %p151 = scmp.eq.s32.totalorder %s150, 0
      %s153 = sadd.s32 %s152, 1
      %s154 = scalar_select %p151, %s152, %s153
      %p157 = pneg %p151
      %p158 = scmp.eq.s32.totalorder %s26, 3
      %p159 = por %p157, %p158
      %p160 = scmp.ne.s32.totalorder %s152, %s155
      %p161 = scmp.eq.s32.totalorder %s26, 0
      %p162 = por %p160, %p161
      %p163 = scmp.ne.s32.totalorder %s152, %s155
      %p164 = scmp.eq.s32.totalorder %s31, 3
      %p165 = por %p163, %p164
      %p166 = scmp.ne.s32.totalorder %s155, %s156
      %p167 = scmp.eq.s32.totalorder %s31, 0
      %p168 = por %p166, %p167
      %p169 = scmp.ne.s32.totalorder %s155, %s156
      %p170 = scmp.eq.s32.totalorder %s32, 3
      %p171 = por %p169, %p170
      %p173 = scmp.ne.s32.totalorder %s156, %s172
      %p174 = scmp.eq.s32.totalorder %s32, 0
      %p175 = por %p173, %p174
      %s176 = ssub.s32 %s34, %s41
      %p177 = scmp.eq.s32.totalorder %s176, 0
      %s179 = sadd.s32 %s178, 1
      %s180 = scalar_select %p177, %s178, %s179
      %p183 = pneg %p177
      %p184 = scmp.eq.s32.totalorder %s26, 3
      %p185 = por %p183, %p184
      %p186 = scmp.ne.s32.totalorder %s178, %s181
      %p187 = scmp.eq.s32.totalorder %s26, 0
      %p188 = por %p186, %p187
      %p189 = scmp.ne.s32.totalorder %s178, %s181
      %p190 = scmp.eq.s32.totalorder %s31, 3
      %p191 = por %p189, %p190
      %p192 = scmp.ne.s32.totalorder %s181, %s182
      %p193 = scmp.eq.s32.totalorder %s31, 0
      %p194 = por %p192, %p193
      %p195 = scmp.ne.s32.totalorder %s181, %s182
      %p196 = scmp.eq.s32.totalorder %s32, 3
      %p197 = por %p195, %p196
      %p199 = scmp.ne.s32.totalorder %s182, %s198
      %p200 = scmp.eq.s32.totalorder %s32, 0
      %p201 = por %p199, %p200
      %s202 = ssub.s32 %s34, %s41
      %p203 = scmp.eq.s32.totalorder %s202, 0
      %s205 = sadd.s32 %s204, 1
      %s206 = scalar_select %p203, %s204, %s205
      %p209 = pneg %p203
      %p210 = scmp.eq.s32.totalorder %s26, 3
      %p211 = por %p209, %p210
      %p212 = scmp.ne.s32.totalorder %s204, %s207
      %p213 = scmp.eq.s32.totalorder %s26, 0
      %p214 = por %p212, %p213
      %p215 = scmp.ne.s32.totalorder %s204, %s207
      %p216 = scmp.eq.s32.totalorder %s31, 3
      %p217 = por %p215, %p216
      %p218 = scmp.ne.s32.totalorder %s207, %s208
      %p219 = scmp.eq.s32.totalorder %s31, 0
      %p220 = por %p218, %p219
      %p221 = scmp.ne.s32.totalorder %s207, %s208
      %p222 = scmp.eq.s32.totalorder %s32, 3
      %p223 = por %p221, %p222
      %p225 = scmp.ne.s32.totalorder %s208, %s224
      %p226 = scmp.eq.s32.totalorder %s32, 0
      %p227 = por %p225, %p226
      %s228 = ssub.s32 %s34, %s41
      %p229 = scmp.eq.s32.totalorder %s228, 0
      %s231 = sadd.s32 %s230, 1
      %s232 = scalar_select %p229, %s230, %s231
      %p235 = pneg %p229
      %p236 = scmp.eq.s32.totalorder %s26, 3
      %p237 = por %p235, %p236
      %p238 = scmp.ne.s32.totalorder %s230, %s233
      %p239 = scmp.eq.s32.totalorder %s26, 0
      %p240 = por %p238, %p239
      %p241 = scmp.ne.s32.totalorder %s230, %s233
      %p242 = scmp.eq.s32.totalorder %s31, 3
      %p243 = por %p241, %p242
      %p244 = scmp.ne.s32.totalorder %s233, %s234
      %p245 = scmp.eq.s32.totalorder %s31, 0
      %p246 = por %p244, %p245
      %p247 = scmp.ne.s32.totalorder %s233, %s234
      %p248 = scmp.eq.s32.totalorder %s32, 3
      %p249 = por %p247, %p248
      %p251 = scmp.ne.s32.totalorder %s234, %s250
      %p252 = scmp.eq.s32.totalorder %s32, 0
      %p253 = por %p251, %p252
      %s254 = ssub.s32 %s34, %s41
      %p255 = scmp.eq.s32.totalorder %s254, 0
      %s257 = sadd.s32 %s256, 1
      %s258 = scalar_select %p255, %s256, %s257
      %p261 = pneg %p255
      %p262 = scmp.eq.s32.totalorder %s26, 3
      %p263 = por %p261, %p262
      %p264 = scmp.ne.s32.totalorder %s256, %s259
      %p265 = scmp.eq.s32.totalorder %s26, 0
      %p266 = por %p264, %p265
      %p267 = scmp.ne.s32.totalorder %s256, %s259
      %p268 = scmp.eq.s32.totalorder %s31, 3
      %p269 = por %p267, %p268
      %p270 = scmp.ne.s32.totalorder %s259, %s260
      %p271 = scmp.eq.s32.totalorder %s31, 0
      %p272 = por %p270, %p271
      %p273 = scmp.ne.s32.totalorder %s259, %s260
      %p274 = scmp.eq.s32.totalorder %s32, 3
      %p275 = por %p273, %p274
      %p277 = scmp.ne.s32.totalorder %s260, %s276
      %p278 = scmp.eq.s32.totalorder %s32, 0
      %p279 = por %p277, %p278
      %s280 = ssub.s32 %s34, %s41
      %p281 = scmp.eq.s32.totalorder %s280, 0
      %s283 = sadd.s32 %s282, 1
      %s284 = scalar_select %p281, %s282, %s283
      %p287 = pneg %p281
      %p288 = scmp.eq.s32.totalorder %s26, 3
      %p289 = por %p287, %p288
      %p290 = scmp.ne.s32.totalorder %s282, %s285
      %p291 = scmp.eq.s32.totalorder %s26, 0
      %p292 = por %p290, %p291
      %p293 = scmp.ne.s32.totalorder %s282, %s285
      %p294 = scmp.eq.s32.totalorder %s31, 3
      %p295 = por %p293, %p294
      %p296 = scmp.ne.s32.totalorder %s285, %s286
      %p297 = scmp.eq.s32.totalorder %s31, 0
      %p298 = por %p296, %p297
      %p299 = scmp.ne.s32.totalorder %s285, %s286
      %p300 = scmp.eq.s32.totalorder %s32, 3
      %p301 = por %p299, %p300
      %p303 = scmp.ne.s32.totalorder %s286, %s302
      %p304 = scmp.eq.s32.totalorder %s32, 0
      %p305 = por %p303, %p304
      %s306 = ssub.s32 %s34, %s41
      %p307 = scmp.eq.s32.totalorder %s306, 0
      %s309 = sadd.s32 %s308, 1
      %s310 = scalar_select %p307, %s308, %s309
      %p313 = pneg %p307
      %p314 = scmp.eq.s32.totalorder %s26, 3
      %p315 = por %p313, %p314
      %p316 = scmp.ne.s32.totalorder %s308, %s311
      %p317 = scmp.eq.s32.totalorder %s26, 0
      %p318 = por %p316, %p317
      %p319 = scmp.ne.s32.totalorder %s308, %s311
      %p320 = scmp.eq.s32.totalorder %s31, 3
      %p321 = por %p319, %p320
      %p322 = scmp.ne.s32.totalorder %s311, %s312
      %p323 = scmp.eq.s32.totalorder %s31, 0
      %p324 = por %p322, %p323
      %p325 = scmp.ne.s32.totalorder %s311, %s312
      %p326 = scmp.eq.s32.totalorder %s32, 3
      %p327 = por %p325, %p326
      %p329 = scmp.ne.s32.totalorder %s312, %s328
      %p330 = scmp.eq.s32.totalorder %s32, 0
      %p331 = por %p329, %p330
      %s332 = ssub.s32 %s34, %s41
      %p333 = scmp.eq.s32.totalorder %s332, 0
      %s335 = sadd.s32 %s334, 1
      %s336 = scalar_select %p333, %s334, %s335
      %p339 = pneg %p333
      %p340 = scmp.eq.s32.totalorder %s26, 3
      %p341 = por %p339, %p340
      %p342 = scmp.ne.s32.totalorder %s334, %s337
      %p343 = scmp.eq.s32.totalorder %s26, 0
      %p344 = por %p342, %p343
      %p345 = scmp.ne.s32.totalorder %s334, %s337
      %p346 = scmp.eq.s32.totalorder %s31, 3
      %p347 = por %p345, %p346
      %p348 = scmp.ne.s32.totalorder %s337, %s338
      %p349 = scmp.eq.s32.totalorder %s31, 0
      %p350 = por %p348, %p349
      %p351 = scmp.ne.s32.totalorder %s337, %s338
      %p352 = scmp.eq.s32.totalorder %s32, 3
      %p353 = por %p351, %p352
      %p355 = scmp.ne.s32.totalorder %s338, %s354
      %p356 = scmp.eq.s32.totalorder %s32, 0
      %p357 = por %p355, %p356
      %s359 = sadd.s32 %s358, 1
      %p362 = scmp.eq.s32.totalorder %s26, 3
      %p363 = scmp.ne.s32.totalorder %s358, %s360
      %p364 = scmp.eq.s32.totalorder %s26, 0
      %p365 = por %p363, %p364
      %p366 = scmp.ne.s32.totalorder %s358, %s360
      %p367 = scmp.eq.s32.totalorder %s31, 3
      %p368 = por %p366, %p367
      %p369 = scmp.ne.s32.totalorder %s360, %s361
      %p370 = scmp.eq.s32.totalorder %s31, 0
      %p371 = por %p369, %p370
      %p372 = scmp.ne.s32.totalorder %s360, %s361
      %p373 = scmp.eq.s32.totalorder %s32, 3
      %p374 = por %p372, %p373
      %p376 = scmp.ne.s32.totalorder %s361, %s375
      %p377 = scmp.eq.s32.totalorder %s32, 0
      %p378 = por %p376, %p377
      %s380 = sadd.s32 %s379, 1
      %p383 = scmp.eq.s32.totalorder %s26, 3
      %p384 = scmp.ne.s32.totalorder %s379, %s381
      %p385 = scmp.eq.s32.totalorder %s26, 0
      %p386 = por %p384, %p385
      %p387 = scmp.ne.s32.totalorder %s379, %s381
      %p388 = scmp.eq.s32.totalorder %s31, 3
      %p389 = por %p387, %p388
      %p390 = scmp.ne.s32.totalorder %s381, %s382
      %p391 = scmp.eq.s32.totalorder %s31, 0
      %p392 = por %p390, %p391
      %p393 = scmp.ne.s32.totalorder %s381, %s382
      %p394 = scmp.eq.s32.totalorder %s32, 3
      %p395 = por %p393, %p394
      %p397 = scmp.ne.s32.totalorder %s382, %s396
      %p398 = scmp.eq.s32.totalorder %s32, 0
      %p399 = por %p397, %p398
      %s400 = ssub.s32 %s33, %s45
      %p401 = scmp.eq.s32.totalorder %s400, 0
      %s403 = sadd.s32 %s402, 1
      %s404 = scalar_select %p401, %s402, %s403
      %p407 = pneg %p401
      %p408 = scmp.eq.s32.totalorder %s26, 3
      %p409 = por %p407, %p408
      %p410 = scmp.ne.s32.totalorder %s402, %s405
      %p411 = scmp.eq.s32.totalorder %s26, 0
      %p412 = por %p410, %p411
      %p413 = scmp.ne.s32.totalorder %s402, %s405
      %p414 = scmp.eq.s32.totalorder %s31, 3
      %p415 = por %p413, %p414
      %p416 = scmp.ne.s32.totalorder %s405, %s406
      %p417 = scmp.eq.s32.totalorder %s31, 0
      %p418 = por %p416, %p417
      %p419 = scmp.ne.s32.totalorder %s405, %s406
      %p420 = scmp.eq.s32.totalorder %s32, 3
      %p421 = por %p419, %p420
      %p423 = scmp.ne.s32.totalorder %s406, %s422
      %p424 = scmp.eq.s32.totalorder %s32, 0
      %p425 = por %p423, %p424
      %p426 = scmp.le.s32.totalorder 1, %s26
      %p427 = scmp.lt.s32.totalorder %s26, 5
      %p428 = pnand %p426, %p427
      %p429 = pneg %p428
      // Predicated region
      $region9: #{tpu_custom_call.1} parent=5 // pred_check
        _
      $region10: #{tpu_custom_call.1} parent=5 // pred_check_branch
        %431 = sbr.rel (%p428) target = $region12
      $region11: #{tpu_custom_call.1} parent=5 // pred_region
        %s432 = ssub.s32 %s26, 1
        // Predicated region
        $region13: #{tpu_custom_call.1} parent=11 // pred_check
          %p433 = pneg %p371
        $region14: #{tpu_custom_call.1} parent=11 // pred_check_branch
          %435 = sbr.rel (%p433) target = $region16
        $region15: #{tpu_custom_call.1} parent=11 // pred_region
          _
        $region16: #{tpu_custom_call.1} parent=11 // pred_fallthru
          _
        // Predicated region
        $region17: #{tpu_custom_call.1} parent=11 // pred_check
          %p436 = pneg %p392
        $region18: #{tpu_custom_call.1} parent=11 // pred_check_branch
          %438 = sbr.rel (%p436) target = $region20
        $region19: #{tpu_custom_call.1} parent=11 // pred_region
          _
        $region20: #{tpu_custom_call.1} parent=11 // pred_fallthru
          _
      $region12: #{tpu_custom_call.1} parent=5 // pred_fallthru
        _
      %p439 = scmp.lt.s32.totalorder %s26, 4
      // Predicated region
      $region21: #{tpu_custom_call.1} parent=5 // pred_check
        %p440 = pneg %p439
      $region22: #{tpu_custom_call.1} parent=5 // pred_check_branch
        %442 = sbr.rel (%p440) target = $region24
      $region23: #{tpu_custom_call.1} parent=5 // pred_region
        // Predicated region
        $region25: #{tpu_custom_call.1} parent=23 // pred_check
          %p443 = pneg %p58
        $region26: #{tpu_custom_call.1} parent=23 // pred_check_branch
          %445 = sbr.rel (%p443) target = $region28
        $region27: #{tpu_custom_call.1} parent=23 // pred_region
          %s446 = sand.u32 %s48, 1
          %s447 = scalar_lea.sflag [#allocation4], %s446
          %s448 = sand.u32 %s48, 1
          %s449 = smul.addr %s448, 8
          %s450 = scalar_lea.vmem [#allocation3], %s449
          %s452 = ssub.s32 128, 128
          %453 = vsyncadd %s447, %s452
          %s454 = smul.addr %s33, 128
          %s455 = scalar_lea.hbm %s0, %s454
          %s457 = sshll.u32 %s450, 4
          %s458 = int_to_ptr.vmem [resolvable:$true] %s457
          %460 = dma.hbm_to_vmem [thread:$0]  %s455, 128, %s458, %s447
        $region28: #{tpu_custom_call.1} parent=23 // pred_fallthru
          _
        // Predicated region
        $region29: #{tpu_custom_call.1} parent=23 // pred_check
          %p461 = pneg %p84
        $region30: #{tpu_custom_call.1} parent=23 // pred_check_branch
          %463 = sbr.rel (%p461) target = $region32
        $region31: #{tpu_custom_call.1} parent=23 // pred_region
          %p464 = scmp.lt.s32.totalorder %s34, 1
          %s465 = scalar_select %p464, %s34, 1
          %s466 = scalar_lea.vmem %s1, %s465
        $region32: #{tpu_custom_call.1} parent=23 // pred_fallthru
          _
        // Predicated region
        $region33: #{tpu_custom_call.1} parent=23 // pred_check
          %p467 = pneg %p110
        $region34: #{tpu_custom_call.1} parent=23 // pred_check_branch
          %469 = sbr.rel (%p467) target = $region36
        $region35: #{tpu_custom_call.1} parent=23 // pred_region
          %p470 = scmp.lt.s32.totalorder %s34, 1
          %s471 = scalar_select %p470, %s34, 1
          %s472 = scalar_lea.vmem %s2, %s471
        $region36: #{tpu_custom_call.1} parent=23 // pred_fallthru
          _
        // Predicated region
        $region37: #{tpu_custom_call.1} parent=23 // pred_check
          %p473 = pneg %p136
        $region38: #{tpu_custom_call.1} parent=23 // pred_check_branch
          %475 = sbr.rel (%p473) target = $region40
        $region39: #{tpu_custom_call.1} parent=23 // pred_region
          %p476 = scmp.lt.s32.totalorder %s34, 1
          %s477 = scalar_select %p476, %s34, 1
          %s478 = smul.addr %s477, 4
          %s479 = smul.addr %s478, 8
          %s480 = scalar_lea.vmem %s3, %s479
        $region40: #{tpu_custom_call.1} parent=23 // pred_fallthru
          _
        // Predicated region
        $region41: #{tpu_custom_call.1} parent=23 // pred_check
          %p481 = pneg %p162
        $region42: #{tpu_custom_call.1} parent=23 // pred_check_branch
          %483 = sbr.rel (%p481) target = $region44
        $region43: #{tpu_custom_call.1} parent=23 // pred_region
          %p484 = scmp.lt.s32.totalorder %s34, 1
          %s485 = scalar_select %p484, %s34, 1
          %s486 = smul.addr %s485, 4
          %s487 = smul.addr %s486, 8
          %s488 = scalar_lea.vmem %s4, %s487
        $region44: #{tpu_custom_call.1} parent=23 // pred_fallthru
          _
        // Predicated region
        $region45: #{tpu_custom_call.1} parent=23 // pred_check
          %p489 = pneg %p188
        $region46: #{tpu_custom_call.1} parent=23 // pred_check_branch
          %491 = sbr.rel (%p489) target = $region48
        $region47: #{tpu_custom_call.1} parent=23 // pred_region
          %p492 = scmp.lt.s32.totalorder %s34, 1
          %s493 = scalar_select %p492, %s34, 1
          %s494 = scalar_lea.vmem %s5, %s493
        $region48: #{tpu_custom_call.1} parent=23 // pred_fallthru
          _
        // Predicated region
        $region49: #{tpu_custom_call.1} parent=23 // pred_check
          %p495 = pneg %p214
        $region50: #{tpu_custom_call.1} parent=23 // pred_check_branch
          %497 = sbr.rel (%p495) target = $region52
        $region51: #{tpu_custom_call.1} parent=23 // pred_region
          %p498 = scmp.lt.s32.totalorder %s34, 1
          %s499 = scalar_select %p498, %s34, 1
          %s500 = scalar_lea.vmem %s6, %s499
        $region52: #{tpu_custom_call.1} parent=23 // pred_fallthru
          _
        // Predicated region
        $region53: #{tpu_custom_call.1} parent=23 // pred_check
          %p501 = pneg %p240
        $region54: #{tpu_custom_call.1} parent=23 // pred_check_branch
          %503 = sbr.rel (%p501) target = $region56
        $region55: #{tpu_custom_call.1} parent=23 // pred_region
          %p504 = scmp.lt.s32.totalorder %s34, 1
          %s505 = scalar_select %p504, %s34, 1
          %s506 = scalar_lea.vmem %s7, %s505
        $region56: #{tpu_custom_call.1} parent=23 // pred_fallthru
          _
        // Predicated region
        $region57: #{tpu_custom_call.1} parent=23 // pred_check
          %p507 = pneg %p266
        $region58: #{tpu_custom_call.1} parent=23 // pred_check_branch
          %509 = sbr.rel (%p507) target = $region60
        $region59: #{tpu_custom_call.1} parent=23 // pred_region
          %p510 = scmp.lt.s32.totalorder %s34, 1
          %s511 = scalar_select %p510, %s34, 1
          %s512 = smul.addr %s511, 4
          %s513 = smul.addr %s512, 8
          %s514 = scalar_lea.vmem %s8, %s513
        $region60: #{tpu_custom_call.1} parent=23 // pred_fallthru
          _
        // Predicated region
        $region61: #{tpu_custom_call.1} parent=23 // pred_check
          %p515 = pneg %p292
        $region62: #{tpu_custom_call.1} parent=23 // pred_check_branch
          %517 = sbr.rel (%p515) target = $region64
        $region63: #{tpu_custom_call.1} parent=23 // pred_region
          %p518 = scmp.lt.s32.totalorder %s34, 1
          %s519 = scalar_select %p518, %s34, 1
          %s520 = scalar_lea.vmem %s9, %s519
        $region64: #{tpu_custom_call.1} parent=23 // pred_fallthru
          _
        // Predicated region
        $region65: #{tpu_custom_call.1} parent=23 // pred_check
          %p521 = pneg %p318
        $region66: #{tpu_custom_call.1} parent=23 // pred_check_branch
          %523 = sbr.rel (%p521) target = $region68
        $region67: #{tpu_custom_call.1} parent=23 // pred_region
          %p524 = scmp.lt.s32.totalorder %s34, 1
          %s525 = scalar_select %p524, %s34, 1
          %s526 = smul.addr %s525, 8
          %s527 = smul.addr %s526, 8
          %s528 = scalar_lea.vmem %s10, %s527
        $region68: #{tpu_custom_call.1} parent=23 // pred_fallthru
          _
        // Predicated region
        $region69: #{tpu_custom_call.1} parent=23 // pred_check
          %p529 = pneg %p344
        $region70: #{tpu_custom_call.1} parent=23 // pred_check_branch
          %531 = sbr.rel (%p529) target = $region72
        $region71: #{tpu_custom_call.1} parent=23 // pred_region
          %p532 = scmp.lt.s32.totalorder %s34, 1
          %s533 = scalar_select %p532, %s34, 1
          %s534 = scalar_lea.vmem %s11, %s533
        $region72: #{tpu_custom_call.1} parent=23 // pred_fallthru
          _
      $region24: #{tpu_custom_call.1} parent=5 // pred_fallthru
        _
      %p535 = scmp.le.s32.totalorder 1, %s26
      %p536 = scmp.lt.s32.totalorder %s26, 5
      %p537 = pnand %p535, %p536
      %p538 = pneg %p537
      // Predicated region
      $region73: #{tpu_custom_call.1} parent=5 // pred_check
        _
      $region74: #{tpu_custom_call.1} parent=5 // pred_check_branch
        %540 = sbr.rel (%p537) target = $region76
      $region75: #{tpu_custom_call.1} parent=5 // pred_region
        %s541 = ssub.s32 %s26, 1
        %s542 = sand.u32 %s51, 1
        %s543 = scalar_lea.sflag [#allocation4], %s542
        %s544 = sand.u32 %s51, 1
        %s545 = smul.addr %s544, 8
        %s546 = scalar_lea.vmem [#allocation3], %s545
        // Predicated region
        $region77: #{tpu_custom_call.1} parent=75 // pred_check
          %p547 = pneg %p64
        $region78: #{tpu_custom_call.1} parent=75 // pred_check_branch
          %549 = sbr.rel (%p547) target = $region80
        $region79: #{tpu_custom_call.1} parent=75 // pred_region
          %550 = dma.done %s543, 128
        $region80: #{tpu_custom_call.1} parent=75 // pred_fallthru
          _
        %s551 = sand.u32 %s51, 1
        %s552 = scalar_lea.sflag [#allocation4], %s551
        %s553 = sand.u32 %s51, 1
        %s554 = smul.addr %s553, 8
        %s555 = scalar_lea.vmem [#allocation3], %s554
        %p556 = pneg %p64
        %p557 = pneg %p61
        %p558 = scmp.lt.s32.totalorder %s36, 1
        %s559 = scalar_select %p558, %s36, 1
        %s560 = scalar_lea.vmem %s1, %s559
        %p561 = pneg %p90
        %p562 = pneg %p87
        %p563 = scmp.lt.s32.totalorder %s36, 1
        %s564 = scalar_select %p563, %s36, 1
        %s565 = scalar_lea.vmem %s2, %s564
        %p566 = pneg %p116
        %p567 = pneg %p113
        %p568 = scmp.lt.s32.totalorder %s36, 1
        %s569 = scalar_select %p568, %s36, 1
        %s570 = smul.addr %s569, 4
        %s571 = smul.addr %s570, 8
        %s572 = scalar_lea.vmem %s3, %s571
        %p573 = pneg %p142
        %p574 = pneg %p139
        %p575 = scmp.lt.s32.totalorder %s36, 1
        %s576 = scalar_select %p575, %s36, 1
        %s577 = smul.addr %s576, 4
        %s578 = smul.addr %s577, 8
        %s579 = scalar_lea.vmem %s4, %s578
        %p580 = pneg %p168
        %p581 = pneg %p165
        %p582 = scmp.lt.s32.totalorder %s36, 1
        %s583 = scalar_select %p582, %s36, 1
        %s584 = scalar_lea.vmem %s5, %s583
        %p585 = pneg %p194
        %p586 = pneg %p191
        %p587 = scmp.lt.s32.totalorder %s36, 1
        %s588 = scalar_select %p587, %s36, 1
        %s589 = scalar_lea.vmem %s6, %s588
        %p590 = pneg %p220
        %p591 = pneg %p217
        %p592 = scmp.lt.s32.totalorder %s36, 1
        %s593 = scalar_select %p592, %s36, 1
        %s594 = scalar_lea.vmem %s7, %s593
        %p595 = pneg %p246
        %p596 = pneg %p243
        %p597 = scmp.lt.s32.totalorder %s36, 1
        %s598 = scalar_select %p597, %s36, 1
        %s599 = smul.addr %s598, 4
        %s600 = smul.addr %s599, 8
        %s601 = scalar_lea.vmem %s8, %s600
        %p602 = pneg %p272
        %p603 = pneg %p269
        %p604 = scmp.lt.s32.totalorder %s36, 1
        %s605 = scalar_select %p604, %s36, 1
        %s606 = scalar_lea.vmem %s9, %s605
        %p607 = pneg %p298
        %p608 = pneg %p295
        %p609 = scmp.lt.s32.totalorder %s36, 1
        %s610 = scalar_select %p609, %s36, 1
        %s611 = smul.addr %s610, 8
        %s612 = smul.addr %s611, 8
        %s613 = scalar_lea.vmem %s10, %s612
        %p614 = pneg %p324
        %p615 = pneg %p321
        %p616 = scmp.lt.s32.totalorder %s36, 1
        %s617 = scalar_select %p616, %s36, 1
        %s618 = scalar_lea.vmem %s11, %s617
        %p619 = pneg %p350
        %p620 = pneg %p347
        %p621 = pneg %p371
        %p622 = pneg %p368
        %p623 = pneg %p392
        %p624 = pneg %p389
        %p625 = pneg %p418
        %p626 = pneg %p415
        %s627 = sand.u32 %s405, 1
        %s628 = scalar_lea.sflag [#allocation5], %s627
        %s629 = sand.u32 %s405, 1
        %s630 = smul.addr %s629, 8
        %s631 = scalar_lea.vmem [#allocation6], %s630
        %p632 = scmp.lt.s32.totalorder %s36, 1
        %s633 = scalar_select %p632, %s36, 1
        %s634 = scalar_lea.vmem %s1, %s633
        %p635 = scmp.lt.s32.totalorder %s36, 1
        %s636 = scalar_select %p635, %s36, 1
        %s637 = scalar_lea.vmem %s2, %s636
        %p638 = scmp.lt.s32.totalorder %s36, 1
        %s639 = scalar_select %p638, %s36, 1
        %s640 = smul.addr %s639, 4
        %s641 = smul.addr %s640, 8
        %s642 = scalar_lea.vmem %s3, %s641
        %p643 = scmp.lt.s32.totalorder %s36, 1
        %s644 = scalar_select %p643, %s36, 1
        %s645 = smul.addr %s644, 4
        %s646 = smul.addr %s645, 8
        %s647 = scalar_lea.vmem %s4, %s646
        %p648 = scmp.lt.s32.totalorder %s36, 1
        %s649 = scalar_select %p648, %s36, 1
        %s650 = scalar_lea.vmem %s5, %s649
        %p651 = scmp.lt.s32.totalorder %s36, 1
        %s652 = scalar_select %p651, %s36, 1
        %s653 = scalar_lea.vmem %s6, %s652
        %p654 = scmp.lt.s32.totalorder %s36, 1
        %s655 = scalar_select %p654, %s36, 1
        %s656 = scalar_lea.vmem %s7, %s655
        %p657 = scmp.lt.s32.totalorder %s36, 1
        %s658 = scalar_select %p657, %s36, 1
        %s659 = smul.addr %s658, 4
        %s660 = smul.addr %s659, 8
        %s661 = scalar_lea.vmem %s8, %s660
        %p662 = scmp.lt.s32.totalorder %s36, 1
        %s663 = scalar_select %p662, %s36, 1
        %s664 = scalar_lea.vmem %s9, %s663
        %p665 = scmp.lt.s32.totalorder %s36, 1
        %s666 = scalar_select %p665, %s36, 1
        %s667 = smul.addr %s666, 8
        %s668 = smul.addr %s667, 8
        %s669 = scalar_lea.vmem %s10, %s668
        %p670 = scmp.lt.s32.totalorder %s36, 1
        %s671 = scalar_select %p670, %s36, 1
        %s672 = scalar_lea.vmem %s11, %s671
        %p673 = scmp.eq.s32.totalorder %s36, 0
        // Predicated region
        $region81: #{tpu_custom_call.1} parent=75 // pred_check
          %p674 = pneg %p673
        $region82: #{tpu_custom_call.1} parent=75 // pred_check_branch
          %676 = sbr.rel (%p674) target = $region84
        $region83: #{tpu_custom_call.1} parent=75 // pred_region
          %v677 = vld [vmem:[%s546] sm:$0xff]
          %vm678 = vcmask 261120
          %679 = vst.msk [vmem:[#allocation2] sm:$0xff] %vm678, %v677
        $region84: #{tpu_custom_call.1} parent=75 // pred_fallthru
          _
        %v680 = vld [vmem:[#allocation2] sm:$0xff]
        %v681 = vld [vmem:[%s634] sm:$0x1]
        %v682 = vld [vmem:[%s637] sm:$0x1]
        %vm683 = vcmask 261120
        %v684 = vsel %vm683, %v680, 0.0
        %685 = vadd.xlane.f32.xlu0 %v684
        %v686 = vpop.xlane.xlu0 %685
        %v687 = vrcp.pop 32.0
        %v688 = vmul.f32 %v686, %v687
        %v689 = vsub.f32 %v680, %v688
        %v690 = vmul.f32 %v689, %v689
        %v691 = vsel %vm683, %v690, 0.0
        %692 = vadd.xlane.f32.xlu0 %v691
        %v693 = vpop.xlane.xlu0 %692
        %v694 = vmul.f32 %v693, %v687
        %v695 = vadd.f32 %v694, 1e-05
        %v696 = vrsqrt.pop %v695
        %v697 = vmul.f32 %v689, %v696
        %v699 = vlaneseq
        %v700 = vshrl.u32 %v699, 7
        %v701 = vsub.s32 0, %v700
        %v702 = vrot.slane %v681, %v701
        %v704 = vmul.f32 %v697, %v702
        %v706 = vlaneseq
        %v707 = vshrl.u32 %v706, 7
        %v708 = vsub.s32 0, %v707
        %v709 = vrot.slane %v682, %v708
        %v711 = vadd.f32 %v704, %v709
        %v712 = vld [vmem:[%s642] sm:$0xff]
        %v713 = vld [vmem:[%s642 + $0x8] sm:$0xff]
        %v714 = vld [vmem:[%s642 + $0x10] sm:$0xff]
        %v715 = vld [vmem:[%s642 + $0x18] sm:$0xff]
        %v717 = vsel %vm683, %v711, 0
        %719 = vmatprep.subr.mxu0 0.0
        %720 = vmatpush1.msra.mxu0 %v712
        %721 = vmatprep.subr.mxu0 0.0
        %722 = vmatpush1.msra.mxu0 %v713
        %723 = vmatprep.subr.mxu0 0.0
        %724 = vmatpush1.msra.mxu0 %v714
        %725 = vmatprep.subr.mxu0 0.0
        %726 = vmatpush1.msra.mxu0 %v715
        %727 = vmatprep.subr.mxu0 0.0
        %728 = vmatpush1.msra.mxu0 0.0
        %729 = vmatprep.subr.mxu0 0.0
        %730 = vmatpush1.msra.mxu0 0.0
        %731 = vmatprep.subr.mxu0 0.0
        %732 = vmatpush1.msra.mxu0 0.0
        %733 = vmatprep.subr.mxu0 0.0
        %734 = vmatpush1.msra.mxu0 0.0
        %735 = vmatprep.subr.mxu0 0.0
        %736 = vmatpush1.msra.mxu0 0.0
        %737 = vmatprep.subr.mxu0 0.0
        %738 = vmatpush1.msra.mxu0 0.0
        %739 = vmatprep.subr.mxu0 0.0
        %740 = vmatpush1.msra.mxu0 0.0
        %741 = vmatprep.subr.mxu0 0.0
        %742 = vmatpush1.msra.mxu0 0.0
        %743 = vmatprep.subr.mxu0 0.0
        %744 = vmatpush1.msra.mxu0 0.0
        %745 = vmatprep.subr.mxu0 0.0
        %746 = vmatpush1.msra.mxu0 0.0
        %747 = vmatprep.subr.mxu0 0.0
        %748 = vmatpush1.msra.mxu0 0.0
        %749 = vmatprep.subr.mxu0 0.0
        %750 = vmatpush1.msra.mxu0 0.0
        %751 = vmatprep.subr.mxu0 0.0
        %752 = vmatpush1.msra.mxu0 0.0
        %753 = vmatprep.subr.mxu0 0.0
        %754 = vmatpush1.msra.mxu0 0.0
        %755 = vmatprep.subr.mxu0 0.0
        %756 = vmatpush1.msra.mxu0 0.0
        %757 = vmatprep.subr.mxu0 0.0
        %758 = vmatpush1.msra.mxu0 0.0
        %759 = vmatprep.subr.mxu0 0.0
        %760 = vmatpush1.msra.mxu0 0.0
        %761 = vmatprep.subr.mxu0 0.0
        %762 = vmatpush1.msra.mxu0 0.0
        %763 = vmatprep.subr.mxu0 0.0
        %764 = vmatpush1.msra.mxu0 0.0
        %765 = vmatprep.subr.mxu0 0.0
        %766 = vmatpush1.msra.mxu0 0.0
        %767 = vmatprep.subr.mxu0 0.0
        %768 = vmatpush1.msra.mxu0 0.0
        %769 = vmatprep.subr.mxu0 0.0
        %770 = vmatpush1.msra.mxu0 0.0
        %771 = vmatprep.subr.mxu0 0.0
        %772 = vmatpush1.msra.mxu0 0.0
        %773 = vmatprep.subr.mxu0 0.0
        %774 = vmatpush1.msra.mxu0 0.0
        %775 = vmatprep.subr.mxu0 0.0
        %776 = vmatpush1.msra.mxu0 0.0
        %777 = vmatprep.subr.mxu0 0.0
        %778 = vmatpush1.msra.mxu0 0.0
        %779 = vmatprep.subr.mxu0 0.0
        %780 = vmatpush1.msra.mxu0 0.0
        %781 = vmatprep.subr.mxu0 0.0
        %782 = vmatpush1.msra.mxu0 0.0
        %783 = vmatprep.mubr.f32.mxu0 0.0
        %784 = vmatmul.mubr.f32.gmra.mrb[0].mxu0 %v717
        %v785 = vpop.f32.mrb[0].mxu0
        %v786 = vadd.f32 0.0, %v785
        %v787 = vpop.f32.mrb[0].mxu0
        %788 = vdwg.mxu0
        %790 = vrot.lane.b32.xlu0 %v786, 120
        %v791 = vpop.permute.xlu0 %790
        %793 = vrot.lane.b32.xlu0 %v786, 112
        %v794 = vpop.permute.xlu0 %793
        %796 = vrot.lane.b32.xlu0 %v786, 104
        %v797 = vpop.permute.xlu0 %796
        %799 = vrot.lane.b32.xlu0 %v786, 96
        %v800 = vpop.permute.xlu0 %799
        %802 = vrot.lane.b32.xlu0 %v786, 88
        %v803 = vpop.permute.xlu0 %802
        %805 = vrot.lane.b32.xlu0 %v786, 80
        %v806 = vpop.permute.xlu0 %805
        %808 = vrot.lane.b32.xlu0 %v786, 72
        %v809 = vpop.permute.xlu0 %808
        %811 = vrot.lane.b32.xlu0 %v786, 64
        %v812 = vpop.permute.xlu0 %811
        %814 = vrot.lane.b32.xlu0 %v786, 56
        %v815 = vpop.permute.xlu0 %814
        %817 = vrot.lane.b32.xlu0 %v786, 48
        %v818 = vpop.permute.xlu0 %817
        %820 = vrot.lane.b32.xlu0 %v786, 40
        %v821 = vpop.permute.xlu0 %820
        %v823 = vcombine.low %v786, %v794
        %v824 = vcombine.high %v786, %v794
        %v826 = vunpack.c.l.s4 1983009808
        %v827 = vunpack.c.0.s8 %v826
        %v828 = vlaneseq
        %v829 = vshrl.u32 %v828, 7
        %v830 = vsub.s32 %v827, %v829
        %v831 = vrot.slane %v823, %v830
        %v833 = vunpack.c.l.s4 1983009808
        %v834 = vunpack.c.0.s8 %v833
        %v835 = vlaneseq
        %v836 = vshrl.u32 %v835, 7
        %v837 = vsub.s32 %v834, %v836
        %v838 = vrot.slane %v824, %v837
        %v839 = vcombine.low %v791, %v797
        %v840 = vcombine.high %v791, %v797
        %v842 = vunpack.c.l.s4 1983009808
        %v843 = vunpack.c.0.s8 %v842
        %v844 = vlaneseq
        %v845 = vshrl.u32 %v844, 7
        %v846 = vsub.s32 %v843, %v845
        %v847 = vrot.slane %v839, %v846
        %v849 = vunpack.c.l.s4 1983009808
        %v850 = vunpack.c.0.s8 %v849
        %v851 = vlaneseq
        %v852 = vshrl.u32 %v851, 7
        %v853 = vsub.s32 %v850, %v852
        %v854 = vrot.slane %v840, %v853
        %v855 = vcombine.low %v800, %v806
        %v856 = vcombine.high %v800, %v806
        %v858 = vunpack.c.l.s4 1983009808
        %v859 = vunpack.c.0.s8 %v858
        %v860 = vlaneseq
        %v861 = vshrl.u32 %v860, 7
        %v862 = vsub.s32 %v859, %v861
        %v863 = vrot.slane %v855, %v862
        %v865 = vunpack.c.l.s4 1983009808
        %v866 = vunpack.c.0.s8 %v865
        %v867 = vlaneseq
        %v868 = vshrl.u32 %v867, 7
        %v869 = vsub.s32 %v866, %v868
        %v870 = vrot.slane %v856, %v869
        %v871 = vcombine.low %v803, %v809
        %v872 = vcombine.high %v803, %v809
        %v874 = vunpack.c.l.s4 1983009808
        %v875 = vunpack.c.0.s8 %v874
        %v876 = vlaneseq
        %v877 = vshrl.u32 %v876, 7
        %v878 = vsub.s32 %v875, %v877
        %v879 = vrot.slane %v871, %v878
        %v881 = vunpack.c.l.s4 1983009808
        %v882 = vunpack.c.0.s8 %v881
        %v883 = vlaneseq
        %v884 = vshrl.u32 %v883, 7
        %v885 = vsub.s32 %v882, %v884
        %v886 = vrot.slane %v872, %v885
        %v887 = vcombine.low %v831, %v847
        %v888 = vcombine.high %v831, %v847
        %v890 = vunpack.c.l.s4 1934713408
        %v891 = vunpack.c.0.s8 %v890
        %v892 = vlaneseq
        %v893 = vshrl.u32 %v892, 7
        %v894 = vsub.s32 %v891, %v893
        %v895 = vrot.slane %v887, %v894
        %v897 = vunpack.c.l.s4 1934713408
        %v898 = vunpack.c.0.s8 %v897
        %v899 = vlaneseq
        %v900 = vshrl.u32 %v899, 7
        %v901 = vsub.s32 %v898, %v900
        %v902 = vrot.slane %v888, %v901
        %v903 = vcombine.low %v838, %v854
        %v904 = vcombine.high %v838, %v854
        %v906 = vunpack.c.l.s4 1934713408
        %v907 = vunpack.c.0.s8 %v906
        %v908 = vlaneseq
        %v909 = vshrl.u32 %v908, 7
        %v910 = vsub.s32 %v907, %v909
        %v911 = vrot.slane %v903, %v910
        %v913 = vunpack.c.l.s4 1934713408
        %v914 = vunpack.c.0.s8 %v913
        %v915 = vlaneseq
        %v916 = vshrl.u32 %v915, 7
        %v917 = vsub.s32 %v914, %v916
        %v918 = vrot.slane %v904, %v917
        %v919 = vcombine.low %v863, %v879
        %v920 = vcombine.high %v863, %v879
        %v922 = vunpack.c.l.s4 1934713408
        %v923 = vunpack.c.0.s8 %v922
        %v924 = vlaneseq
        %v925 = vshrl.u32 %v924, 7
        %v926 = vsub.s32 %v923, %v925
        %v927 = vrot.slane %v919, %v926
        %v929 = vunpack.c.l.s4 1934713408
        %v930 = vunpack.c.0.s8 %v929
        %v931 = vlaneseq
        %v932 = vshrl.u32 %v931, 7
        %v933 = vsub.s32 %v930, %v932
        %v934 = vrot.slane %v920, %v933
        %v935 = vcombine.low %v870, %v886
        %v936 = vcombine.high %v870, %v886
        %v938 = vunpack.c.l.s4 1934713408
        %v939 = vunpack.c.0.s8 %v938
        %v940 = vlaneseq
        %v941 = vshrl.u32 %v940, 7
        %v942 = vsub.s32 %v939, %v941
        %v943 = vrot.slane %v935, %v942
        %v945 = vunpack.c.l.s4 1934713408
        %v946 = vunpack.c.0.s8 %v945
        %v947 = vlaneseq
        %v948 = vshrl.u32 %v947, 7
        %v949 = vsub.s32 %v946, %v948
        %v950 = vrot.slane %v936, %v949
        %v951 = vcombine.low %v895, %v927
        %v952 = vcombine.high %v895, %v927
        %v953 = vcombine.low %v902, %v934
        %v954 = vcombine.high %v902, %v934
        %v955 = vcombine.low %v911, %v943
        %v956 = vcombine.high %v911, %v943
        %v957 = vcombine.low %v918, %v950
        %v958 = vcombine.high %v918, %v950
        %v959 = vcombine.low %v812, %v818
        %v960 = vcombine.high %v812, %v818
        %v962 = vunpack.c.l.s4 1983009808
        %v963 = vunpack.c.0.s8 %v962
        %v964 = vlaneseq
        %v965 = vshrl.u32 %v964, 7
        %v966 = vsub.s32 %v963, %v965
        %v967 = vrot.slane %v959, %v966
        %v969 = vunpack.c.l.s4 1983009808
        %v970 = vunpack.c.0.s8 %v969
        %v971 = vlaneseq
        %v972 = vshrl.u32 %v971, 7
        %v973 = vsub.s32 %v970, %v972
        %v974 = vrot.slane %v960, %v973
        %v975 = vcombine.low %v815, %v821
        %v976 = vcombine.high %v815, %v821
        %v978 = vunpack.c.l.s4 1983009808
        %v979 = vunpack.c.0.s8 %v978
        %v980 = vlaneseq
        %v981 = vshrl.u32 %v980, 7
        %v982 = vsub.s32 %v979, %v981
        %v983 = vrot.slane %v975, %v982
        %v985 = vunpack.c.l.s4 1983009808
        %v986 = vunpack.c.0.s8 %v985
        %v987 = vlaneseq
        %v988 = vshrl.u32 %v987, 7
        %v989 = vsub.s32 %v986, %v988
        %v990 = vrot.slane %v976, %v989
        %v991 = vcombine.low %v967, %v983
        %v992 = vcombine.high %v967, %v983
        %v994 = vunpack.c.l.s4 1934713408
        %v995 = vunpack.c.0.s8 %v994
        %v996 = vlaneseq
        %v997 = vshrl.u32 %v996, 7
        %v998 = vsub.s32 %v995, %v997
        %v999 = vrot.slane %v991, %v998
        %v1001 = vunpack.c.l.s4 1934713408
        %v1002 = vunpack.c.0.s8 %v1001
        %v1003 = vlaneseq
        %v1004 = vshrl.u32 %v1003, 7
        %v1005 = vsub.s32 %v1002, %v1004
        %v1006 = vrot.slane %v992, %v1005
        %v1007 = vcombine.low %v974, %v990
        %v1008 = vcombine.high %v974, %v990
        %v1010 = vunpack.c.l.s4 1934713408
        %v1011 = vunpack.c.0.s8 %v1010
        %v1012 = vlaneseq
        %v1013 = vshrl.u32 %v1012, 7
        %v1014 = vsub.s32 %v1011, %v1013
        %v1015 = vrot.slane %v1007, %v1014
        %v1017 = vunpack.c.l.s4 1934713408
        %v1018 = vunpack.c.0.s8 %v1017
        %v1019 = vlaneseq
        %v1020 = vshrl.u32 %v1019, 7
        %v1021 = vsub.s32 %v1018, %v1020
        %v1022 = vrot.slane %v1008, %v1021
        %v1023 = vcombine.high %v999, 0.0
        %v1024 = vcombine.high %v1006, 0.0
        %v1025 = vcombine.high %v1015, 0.0
        %v1026 = vcombine.high %v1022, 0.0
        %v1027 = vcombine.low %v951, %v953
        %v1028 = vcombine.high %v951, %v953
        %v1030 = vunpack.c.l.s4 1983009808
        %v1031 = vunpack.c.0.s8 %v1030
        %v1032 = vlaneseq
        %v1033 = vshrl.u32 %v1032, 7
        %v1034 = vsub.s32 %v1031, %v1033
        %v1035 = vrot.slane %v1027, %v1034
        %v1037 = vunpack.c.l.s4 1983009808
        %v1038 = vunpack.c.0.s8 %v1037
        %v1039 = vlaneseq
        %v1040 = vshrl.u32 %v1039, 7
        %v1041 = vsub.s32 %v1038, %v1040
        %v1042 = vrot.slane %v1028, %v1041
        %v1043 = vcombine.low %v952, %v954
        %v1044 = vcombine.high %v952, %v954
        %v1046 = vunpack.c.l.s4 1983009808
        %v1047 = vunpack.c.0.s8 %v1046
        %v1048 = vlaneseq
        %v1049 = vshrl.u32 %v1048, 7
        %v1050 = vsub.s32 %v1047, %v1049
        %v1051 = vrot.slane %v1043, %v1050
        %v1053 = vunpack.c.l.s4 1983009808
        %v1054 = vunpack.c.0.s8 %v1053
        %v1055 = vlaneseq
        %v1056 = vshrl.u32 %v1055, 7
        %v1057 = vsub.s32 %v1054, %v1056
        %v1058 = vrot.slane %v1044, %v1057
        %v1059 = vcombine.low %v955, %v957
        %v1060 = vcombine.high %v955, %v957
        %v1062 = vunpack.c.l.s4 1983009808
        %v1063 = vunpack.c.0.s8 %v1062
        %v1064 = vlaneseq
        %v1065 = vshrl.u32 %v1064, 7
        %v1066 = vsub.s32 %v1063, %v1065
        %v1067 = vrot.slane %v1059, %v1066
        %v1069 = vunpack.c.l.s4 1983009808
        %v1070 = vunpack.c.0.s8 %v1069
        %v1071 = vlaneseq
        %v1072 = vshrl.u32 %v1071, 7
        %v1073 = vsub.s32 %v1070, %v1072
        %v1074 = vrot.slane %v1060, %v1073
        %v1075 = vcombine.low %v956, %v958
        %v1076 = vcombine.high %v956, %v958
        %v1078 = vunpack.c.l.s4 1983009808
        %v1079 = vunpack.c.0.s8 %v1078
        %v1080 = vlaneseq
        %v1081 = vshrl.u32 %v1080, 7
        %v1082 = vsub.s32 %v1079, %v1081
        %v1083 = vrot.slane %v1075, %v1082
        %v1085 = vunpack.c.l.s4 1983009808
        %v1086 = vunpack.c.0.s8 %v1085
        %v1087 = vlaneseq
        %v1088 = vshrl.u32 %v1087, 7
        %v1089 = vsub.s32 %v1086, %v1088
        %v1090 = vrot.slane %v1076, %v1089
        %v1091 = vcombine.low %v1035, %v1051
        %v1092 = vcombine.high %v1035, %v1051
        %v1094 = vunpack.c.l.s4 1934713408
        %v1095 = vunpack.c.0.s8 %v1094
        %v1096 = vlaneseq
        %v1097 = vshrl.u32 %v1096, 7
        %v1098 = vsub.s32 %v1095, %v1097
        %v1099 = vrot.slane %v1091, %v1098
        %v1101 = vunpack.c.l.s4 1934713408
        %v1102 = vunpack.c.0.s8 %v1101
        %v1103 = vlaneseq
        %v1104 = vshrl.u32 %v1103, 7
        %v1105 = vsub.s32 %v1102, %v1104
        %v1106 = vrot.slane %v1092, %v1105
        %v1107 = vcombine.low %v1042, %v1058
        %v1108 = vcombine.high %v1042, %v1058
        %v1110 = vunpack.c.l.s4 1934713408
        %v1111 = vunpack.c.0.s8 %v1110
        %v1112 = vlaneseq
        %v1113 = vshrl.u32 %v1112, 7
        %v1114 = vsub.s32 %v1111, %v1113
        %v1115 = vrot.slane %v1107, %v1114
        %v1117 = vunpack.c.l.s4 1934713408
        %v1118 = vunpack.c.0.s8 %v1117
        %v1119 = vlaneseq
        %v1120 = vshrl.u32 %v1119, 7
        %v1121 = vsub.s32 %v1118, %v1120
        %v1122 = vrot.slane %v1108, %v1121
        %v1123 = vcombine.low %v1067, %v1083
        %v1124 = vcombine.high %v1067, %v1083
        %v1126 = vunpack.c.l.s4 1934713408
        %v1127 = vunpack.c.0.s8 %v1126
        %v1128 = vlaneseq
        %v1129 = vshrl.u32 %v1128, 7
        %v1130 = vsub.s32 %v1127, %v1129
        %v1131 = vrot.slane %v1123, %v1130
        %v1133 = vunpack.c.l.s4 1934713408
        %v1134 = vunpack.c.0.s8 %v1133
        %v1135 = vlaneseq
        %v1136 = vshrl.u32 %v1135, 7
        %v1137 = vsub.s32 %v1134, %v1136
        %v1138 = vrot.slane %v1124, %v1137
        %v1139 = vcombine.low %v1074, %v1090
        %v1140 = vcombine.high %v1074, %v1090
        %v1142 = vunpack.c.l.s4 1934713408
        %v1143 = vunpack.c.0.s8 %v1142
        %v1144 = vlaneseq
        %v1145 = vshrl.u32 %v1144, 7
        %v1146 = vsub.s32 %v1143, %v1145
        %v1147 = vrot.slane %v1139, %v1146
        %v1149 = vunpack.c.l.s4 1934713408
        %v1150 = vunpack.c.0.s8 %v1149
        %v1151 = vlaneseq
        %v1152 = vshrl.u32 %v1151, 7
        %v1153 = vsub.s32 %v1150, %v1152
        %v1154 = vrot.slane %v1140, %v1153
        %v1155 = vcombine.low %v1099, %v1131
        %v1156 = vcombine.high %v1099, %v1131
        %v1157 = vcombine.low %v1106, %v1138
        %v1158 = vcombine.high %v1106, %v1138
        %v1159 = vcombine.low %v1115, %v1147
        %v1160 = vcombine.high %v1115, %v1147
        %v1161 = vcombine.low %v1122, %v1154
        %v1162 = vcombine.high %v1122, %v1154
        %v1163 = vcombine.low %v999, %v1006
        %v1165 = vunpack.c.l.s4 1983009808
        %v1166 = vunpack.c.0.s8 %v1165
        %v1167 = vlaneseq
        %v1168 = vshrl.u32 %v1167, 7
        %v1169 = vsub.s32 %v1166, %v1168
        %v1170 = vrot.slane %v1163, %v1169
        %v1171 = vcombine.low %v1023, %v1024
        %v1173 = vunpack.c.l.s4 1983009808
        %v1174 = vunpack.c.0.s8 %v1173
        %v1175 = vlaneseq
        %v1176 = vshrl.u32 %v1175, 7
        %v1177 = vsub.s32 %v1174, %v1176
        %v1178 = vrot.slane %v1171, %v1177
        %v1179 = vcombine.low %v1015, %v1022
        %v1181 = vunpack.c.l.s4 1983009808
        %v1182 = vunpack.c.0.s8 %v1181
        %v1183 = vlaneseq
        %v1184 = vshrl.u32 %v1183, 7
        %v1185 = vsub.s32 %v1182, %v1184
        %v1186 = vrot.slane %v1179, %v1185
        %v1187 = vcombine.low %v1025, %v1026
        %v1189 = vunpack.c.l.s4 1983009808
        %v1190 = vunpack.c.0.s8 %v1189
        %v1191 = vlaneseq
        %v1192 = vshrl.u32 %v1191, 7
        %v1193 = vsub.s32 %v1190, %v1192
        %v1194 = vrot.slane %v1187, %v1193
        %v1195 = vcombine.low %v1170, %v1178
        %v1196 = vcombine.high %v1170, %v1178
        %v1198 = vunpack.c.l.s4 1934713408
        %v1199 = vunpack.c.0.s8 %v1198
        %v1200 = vlaneseq
        %v1201 = vshrl.u32 %v1200, 7
        %v1202 = vsub.s32 %v1199, %v1201
        %v1203 = vrot.slane %v1195, %v1202
        %v1205 = vunpack.c.l.s4 1934713408
        %v1206 = vunpack.c.0.s8 %v1205
        %v1207 = vlaneseq
        %v1208 = vshrl.u32 %v1207, 7
        %v1209 = vsub.s32 %v1206, %v1208
        %v1210 = vrot.slane %v1196, %v1209
        %v1211 = vcombine.low %v1186, %v1194
        %v1212 = vcombine.high %v1186, %v1194
        %v1214 = vunpack.c.l.s4 1934713408
        %v1215 = vunpack.c.0.s8 %v1214
        %v1216 = vlaneseq
        %v1217 = vshrl.u32 %v1216, 7
        %v1218 = vsub.s32 %v1215, %v1217
        %v1219 = vrot.slane %v1211, %v1218
        %v1221 = vunpack.c.l.s4 1934713408
        %v1222 = vunpack.c.0.s8 %v1221
        %v1223 = vlaneseq
        %v1224 = vshrl.u32 %v1223, 7
        %v1225 = vsub.s32 %v1222, %v1224
        %v1226 = vrot.slane %v1212, %v1225
        %v1227 = vcombine.low %v1203, %v1219
        %v1228 = vcombine.high %v1203, %v1219
        %v1229 = vcombine.low %v1210, %v1226
        %v1230 = vcombine.high %v1210, %v1226
        %vm1231 = vcmask 64512
        %v1233 = vsel %vm1231, %v1155, 0
        %v1236 = vsel %vm1231, %v1159, 0
        %1238 = vmatprep.subr.mxu0 0.0
        %1239 = vmatpush1.xpose.msra.mxu0 %v1236
        %1240 = vmatprep.subr.mxu0 0.0
        %1241 = vmatpush1.xpose.msra.mxu0 0.0
        %1242 = vmatprep.subr.mxu0 0.0
        %1243 = vmatpush1.xpose.msra.mxu0 0.0
        %1244 = vmatprep.subr.mxu0 0.0
        %1245 = vmatpush1.xpose.msra.mxu0 0.0
        %1246 = vmatprep.subr.mxu0 0.0
        %1247 = vmatpush1.xpose.msra.mxu0 0.0
        %1248 = vmatprep.subr.mxu0 0.0
        %1249 = vmatpush1.xpose.msra.mxu0 0.0
        %1250 = vmatprep.subr.mxu0 0.0
        %1251 = vmatpush1.xpose.msra.mxu0 0.0
        %1252 = vmatprep.subr.mxu0 0.0
        %1253 = vmatpush1.xpose.msra.mxu0 0.0
        %1254 = vmatprep.subr.mxu0 0.0
        %1255 = vmatpush1.xpose.msra.mxu0 0.0
        %1256 = vmatprep.subr.mxu0 0.0
        %1257 = vmatpush1.xpose.msra.mxu0 0.0
        %1258 = vmatprep.subr.mxu0 0.0
        %1259 = vmatpush1.xpose.msra.mxu0 0.0
        %1260 = vmatprep.subr.mxu0 0.0
        %1261 = vmatpush1.xpose.msra.mxu0 0.0
        %1262 = vmatprep.subr.mxu0 0.0
        %1263 = vmatpush1.xpose.msra.mxu0 0.0
        %1264 = vmatprep.subr.mxu0 0.0
        %1265 = vmatpush1.xpose.msra.mxu0 0.0
        %1266 = vmatprep.subr.mxu0 0.0
        %1267 = vmatpush1.xpose.msra.mxu0 0.0
        %1268 = vmatprep.subr.mxu0 0.0
        %1269 = vmatpush1.xpose.msra.mxu0 0.0
        %1270 = vmatprep.subr.mxu0 0.0
        %1271 = vmatpush1.xpose.msra.mxu0 0.0
        %1272 = vmatprep.subr.mxu0 0.0
        %1273 = vmatpush1.xpose.msra.mxu0 0.0
        %1274 = vmatprep.subr.mxu0 0.0
        %1275 = vmatpush1.xpose.msra.mxu0 0.0
        %1276 = vmatprep.subr.mxu0 0.0
        %1277 = vmatpush1.xpose.msra.mxu0 0.0
        %1278 = vmatprep.subr.mxu0 0.0
        %1279 = vmatpush1.xpose.msra.mxu0 0.0
        %1280 = vmatprep.subr.mxu0 0.0
        %1281 = vmatpush1.xpose.msra.mxu0 0.0
        %1282 = vmatprep.subr.mxu0 0.0
        %1283 = vmatpush1.xpose.msra.mxu0 0.0
        %1284 = vmatprep.subr.mxu0 0.0
        %1285 = vmatpush1.xpose.msra.mxu0 0.0
        %1286 = vmatprep.subr.mxu0 0.0
        %1287 = vmatpush1.xpose.msra.mxu0 0.0
        %1288 = vmatprep.subr.mxu0 0.0
        %1289 = vmatpush1.xpose.msra.mxu0 0.0
        %1290 = vmatprep.subr.mxu0 0.0
        %1291 = vmatpush1.xpose.msra.mxu0 0.0
        %1292 = vmatprep.subr.mxu0 0.0
        %1293 = vmatpush1.xpose.msra.mxu0 0.0
        %1294 = vmatprep.subr.mxu0 0.0
        %1295 = vmatpush1.xpose.msra.mxu0 0.0
        %1296 = vmatprep.subr.mxu0 0.0
        %1297 = vmatpush1.xpose.msra.mxu0 0.0
        %1298 = vmatprep.subr.mxu0 0.0
        %1299 = vmatpush1.xpose.msra.mxu0 0.0
        %1300 = vmatprep.subr.mxu0 0.0
        %1301 = vmatpush1.xpose.msra.mxu0 0.0
        %1302 = vmatprep.mubr.f32.mxu0 0.0
        %1303 = vmatmul.mubr.f32.gmra.mrb[0].mxu0 %v1233
        %v1304 = vpop.f32.mrb[0].mxu0
        %v1305 = vadd.f32 0.0, %v1304
        %v1306 = vpop.f32.mrb[0].mxu0
        %1307 = vdwg.mxu0
        %v1309 = vsel %vm1231, %v1156, 0
        %v1312 = vsel %vm1231, %v1160, 0
        %1314 = vmatprep.subr.mxu0 0.0
        %1315 = vmatpush1.xpose.msra.mxu0 %v1312
        %1316 = vmatprep.subr.mxu0 0.0
        %1317 = vmatpush1.xpose.msra.mxu0 0.0
        %1318 = vmatprep.subr.mxu0 0.0
        %1319 = vmatpush1.xpose.msra.mxu0 0.0
        %1320 = vmatprep.subr.mxu0 0.0
        %1321 = vmatpush1.xpose.msra.mxu0 0.0
        %1322 = vmatprep.subr.mxu0 0.0
        %1323 = vmatpush1.xpose.msra.mxu0 0.0
        %1324 = vmatprep.subr.mxu0 0.0
        %1325 = vmatpush1.xpose.msra.mxu0 0.0
        %1326 = vmatprep.subr.mxu0 0.0
        %1327 = vmatpush1.xpose.msra.mxu0 0.0
        %1328 = vmatprep.subr.mxu0 0.0
        %1329 = vmatpush1.xpose.msra.mxu0 0.0
        %1330 = vmatprep.subr.mxu0 0.0
        %1331 = vmatpush1.xpose.msra.mxu0 0.0
        %1332 = vmatprep.subr.mxu0 0.0
        %1333 = vmatpush1.xpose.msra.mxu0 0.0
        %1334 = vmatprep.subr.mxu0 0.0
        %1335 = vmatpush1.xpose.msra.mxu0 0.0
        %1336 = vmatprep.subr.mxu0 0.0
        %1337 = vmatpush1.xpose.msra.mxu0 0.0
        %1338 = vmatprep.subr.mxu0 0.0
        %1339 = vmatpush1.xpose.msra.mxu0 0.0
        %1340 = vmatprep.subr.mxu0 0.0
        %1341 = vmatpush1.xpose.msra.mxu0 0.0
        %1342 = vmatprep.subr.mxu0 0.0
        %1343 = vmatpush1.xpose.msra.mxu0 0.0
        %1344 = vmatprep.subr.mxu0 0.0
        %1345 = vmatpush1.xpose.msra.mxu0 0.0
        %1346 = vmatprep.subr.mxu0 0.0
        %1347 = vmatpush1.xpose.msra.mxu0 0.0
        %1348 = vmatprep.subr.mxu0 0.0
        %1349 = vmatpush1.xpose.msra.mxu0 0.0
        %1350 = vmatprep.subr.mxu0 0.0
        %1351 = vmatpush1.xpose.msra.mxu0 0.0
        %1352 = vmatprep.subr.mxu0 0.0
        %1353 = vmatpush1.xpose.msra.mxu0 0.0
        %1354 = vmatprep.subr.mxu0 0.0
        %1355 = vmatpush1.xpose.msra.mxu0 0.0
        %1356 = vmatprep.subr.mxu0 0.0
        %1357 = vmatpush1.xpose.msra.mxu0 0.0
        %1358 = vmatprep.subr.mxu0 0.0
        %1359 = vmatpush1.xpose.msra.mxu0 0.0
        %1360 = vmatprep.subr.mxu0 0.0
        %1361 = vmatpush1.xpose.msra.mxu0 0.0
        %1362 = vmatprep.subr.mxu0 0.0
        %1363 = vmatpush1.xpose.msra.mxu0 0.0
        %1364 = vmatprep.subr.mxu0 0.0
        %1365 = vmatpush1.xpose.msra.mxu0 0.0
        %1366 = vmatprep.subr.mxu0 0.0
        %1367 = vmatpush1.xpose.msra.mxu0 0.0
        %1368 = vmatprep.subr.mxu0 0.0
        %1369 = vmatpush1.xpose.msra.mxu0 0.0
        %1370 = vmatprep.subr.mxu0 0.0
        %1371 = vmatpush1.xpose.msra.mxu0 0.0
        %1372 = vmatprep.subr.mxu0 0.0
        %1373 = vmatpush1.xpose.msra.mxu0 0.0
        %1374 = vmatprep.subr.mxu0 0.0
        %1375 = vmatpush1.xpose.msra.mxu0 0.0
        %1376 = vmatprep.subr.mxu0 0.0
        %1377 = vmatpush1.xpose.msra.mxu0 0.0
        %1378 = vmatprep.mubr.f32.mxu0 0.0
        %1379 = vmatmul.mubr.f32.gmra.mrb[0].mxu0 %v1309
        %v1380 = vpop.f32.mrb[0].mxu0
        %v1381 = vadd.f32 0.0, %v1380
        %v1382 = vpop.f32.mrb[0].mxu0
        %1383 = vdwg.mxu0
        %v1385 = vsel %vm1231, %v1157, 0
        %v1388 = vsel %vm1231, %v1161, 0
        %1390 = vmatprep.subr.mxu0 0.0
        %1391 = vmatpush1.xpose.msra.mxu0 %v1388
        %1392 = vmatprep.subr.mxu0 0.0
        %1393 = vmatpush1.xpose.msra.mxu0 0.0
        %1394 = vmatprep.subr.mxu0 0.0
        %1395 = vmatpush1.xpose.msra.mxu0 0.0
        %1396 = vmatprep.subr.mxu0 0.0
        %1397 = vmatpush1.xpose.msra.mxu0 0.0
        %1398 = vmatprep.subr.mxu0 0.0
        %1399 = vmatpush1.xpose.msra.mxu0 0.0
        %1400 = vmatprep.subr.mxu0 0.0
        %1401 = vmatpush1.xpose.msra.mxu0 0.0
        %1402 = vmatprep.subr.mxu0 0.0
        %1403 = vmatpush1.xpose.msra.mxu0 0.0
        %1404 = vmatprep.subr.mxu0 0.0
        %1405 = vmatpush1.xpose.msra.mxu0 0.0
        %1406 = vmatprep.subr.mxu0 0.0
        %1407 = vmatpush1.xpose.msra.mxu0 0.0
        %1408 = vmatprep.subr.mxu0 0.0
        %1409 = vmatpush1.xpose.msra.mxu0 0.0
        %1410 = vmatprep.subr.mxu0 0.0
        %1411 = vmatpush1.xpose.msra.mxu0 0.0
        %1412 = vmatprep.subr.mxu0 0.0
        %1413 = vmatpush1.xpose.msra.mxu0 0.0
        %1414 = vmatprep.subr.mxu0 0.0
        %1415 = vmatpush1.xpose.msra.mxu0 0.0
        %1416 = vmatprep.subr.mxu0 0.0
        %1417 = vmatpush1.xpose.msra.mxu0 0.0
        %1418 = vmatprep.subr.mxu0 0.0
        %1419 = vmatpush1.xpose.msra.mxu0 0.0
        %1420 = vmatprep.subr.mxu0 0.0
        %1421 = vmatpush1.xpose.msra.mxu0 0.0
        %1422 = vmatprep.subr.mxu0 0.0
        %1423 = vmatpush1.xpose.msra.mxu0 0.0
        %1424 = vmatprep.subr.mxu0 0.0
        %1425 = vmatpush1.xpose.msra.mxu0 0.0
        %1426 = vmatprep.subr.mxu0 0.0
        %1427 = vmatpush1.xpose.msra.mxu0 0.0
        %1428 = vmatprep.subr.mxu0 0.0
        %1429 = vmatpush1.xpose.msra.mxu0 0.0
        %1430 = vmatprep.subr.mxu0 0.0
        %1431 = vmatpush1.xpose.msra.mxu0 0.0
        %1432 = vmatprep.subr.mxu0 0.0
        %1433 = vmatpush1.xpose.msra.mxu0 0.0
        %1434 = vmatprep.subr.mxu0 0.0
        %1435 = vmatpush1.xpose.msra.mxu0 0.0
        %1436 = vmatprep.subr.mxu0 0.0
        %1437 = vmatpush1.xpose.msra.mxu0 0.0
        %1438 = vmatprep.subr.mxu0 0.0
        %1439 = vmatpush1.xpose.msra.mxu0 0.0
        %1440 = vmatprep.subr.mxu0 0.0
        %1441 = vmatpush1.xpose.msra.mxu0 0.0
        %1442 = vmatprep.subr.mxu0 0.0
        %1443 = vmatpush1.xpose.msra.mxu0 0.0
        %1444 = vmatprep.subr.mxu0 0.0
        %1445 = vmatpush1.xpose.msra.mxu0 0.0
        %1446 = vmatprep.subr.mxu0 0.0
        %1447 = vmatpush1.xpose.msra.mxu0 0.0
        %1448 = vmatprep.subr.mxu0 0.0
        %1449 = vmatpush1.xpose.msra.mxu0 0.0
        %1450 = vmatprep.subr.mxu0 0.0
        %1451 = vmatpush1.xpose.msra.mxu0 0.0
        %1452 = vmatprep.subr.mxu0 0.0
        %1453 = vmatpush1.xpose.msra.mxu0 0.0
        %1454 = vmatprep.mubr.f32.mxu0 0.0
        %1455 = vmatmul.mubr.f32.gmra.mrb[0].mxu0 %v1385
        %v1456 = vpop.f32.mrb[0].mxu0
        %v1457 = vadd.f32 0.0, %v1456
        %v1458 = vpop.f32.mrb[0].mxu0
        %1459 = vdwg.mxu0
        %v1461 = vsel %vm1231, %v1158, 0
        %v1464 = vsel %vm1231, %v1162, 0
        %1466 = vmatprep.subr.mxu0 0.0
        %1467 = vmatpush1.xpose.msra.mxu0 %v1464
        %1468 = vmatprep.subr.mxu0 0.0
        %1469 = vmatpush1.xpose.msra.mxu0 0.0
        %1470 = vmatprep.subr.mxu0 0.0
        %1471 = vmatpush1.xpose.msra.mxu0 0.0
        %1472 = vmatprep.subr.mxu0 0.0
        %1473 = vmatpush1.xpose.msra.mxu0 0.0
        %1474 = vmatprep.subr.mxu0 0.0
        %1475 = vmatpush1.xpose.msra.mxu0 0.0
        %1476 = vmatprep.subr.mxu0 0.0
        %1477 = vmatpush1.xpose.msra.mxu0 0.0
        %1478 = vmatprep.subr.mxu0 0.0
        %1479 = vmatpush1.xpose.msra.mxu0 0.0
        %1480 = vmatprep.subr.mxu0 0.0
        %1481 = vmatpush1.xpose.msra.mxu0 0.0
        %1482 = vmatprep.subr.mxu0 0.0
        %1483 = vmatpush1.xpose.msra.mxu0 0.0
        %1484 = vmatprep.subr.mxu0 0.0
        %1485 = vmatpush1.xpose.msra.mxu0 0.0
        %1486 = vmatprep.subr.mxu0 0.0
        %1487 = vmatpush1.xpose.msra.mxu0 0.0
        %1488 = vmatprep.subr.mxu0 0.0
        %1489 = vmatpush1.xpose.msra.mxu0 0.0
        %1490 = vmatprep.subr.mxu0 0.0
        %1491 = vmatpush1.xpose.msra.mxu0 0.0
        %1492 = vmatprep.subr.mxu0 0.0
        %1493 = vmatpush1.xpose.msra.mxu0 0.0
        %1494 = vmatprep.subr.mxu0 0.0
        %1495 = vmatpush1.xpose.msra.mxu0 0.0
        %1496 = vmatprep.subr.mxu0 0.0
        %1497 = vmatpush1.xpose.msra.mxu0 0.0
        %1498 = vmatprep.subr.mxu0 0.0
        %1499 = vmatpush1.xpose.msra.mxu0 0.0
        %1500 = vmatprep.subr.mxu0 0.0
        %1501 = vmatpush1.xpose.msra.mxu0 0.0
        %1502 = vmatprep.subr.mxu0 0.0
        %1503 = vmatpush1.xpose.msra.mxu0 0.0
        %1504 = vmatprep.subr.mxu0 0.0
        %1505 = vmatpush1.xpose.msra.mxu0 0.0
        %1506 = vmatprep.subr.mxu0 0.0
        %1507 = vmatpush1.xpose.msra.mxu0 0.0
        %1508 = vmatprep.subr.mxu0 0.0
        %1509 = vmatpush1.xpose.msra.mxu0 0.0
        %1510 = vmatprep.subr.mxu0 0.0
        %1511 = vmatpush1.xpose.msra.mxu0 0.0
        %1512 = vmatprep.subr.mxu0 0.0
        %1513 = vmatpush1.xpose.msra.mxu0 0.0
        %1514 = vmatprep.subr.mxu0 0.0
        %1515 = vmatpush1.xpose.msra.mxu0 0.0
        %1516 = vmatprep.subr.mxu0 0.0
        %1517 = vmatpush1.xpose.msra.mxu0 0.0
        %1518 = vmatprep.subr.mxu0 0.0
        %1519 = vmatpush1.xpose.msra.mxu0 0.0
        %1520 = vmatprep.subr.mxu0 0.0
        %1521 = vmatpush1.xpose.msra.mxu0 0.0
        %1522 = vmatprep.subr.mxu0 0.0
        %1523 = vmatpush1.xpose.msra.mxu0 0.0
        %1524 = vmatprep.subr.mxu0 0.0
        %1525 = vmatpush1.xpose.msra.mxu0 0.0
        %1526 = vmatprep.subr.mxu0 0.0
        %1527 = vmatpush1.xpose.msra.mxu0 0.0
        %1528 = vmatprep.subr.mxu0 0.0
        %1529 = vmatpush1.xpose.msra.mxu0 0.0
        %1530 = vmatprep.mubr.f32.mxu0 0.0
        %1531 = vmatmul.mubr.f32.gmra.mrb[0].mxu0 %v1461
        %v1532 = vpop.f32.mrb[0].mxu0
        %v1533 = vadd.f32 0.0, %v1532
        %v1534 = vpop.f32.mrb[0].mxu0
        %1535 = vdwg.mxu0
        %v1536 = vsel %vm1231, %v1305, -inf
        %1537 = vmax.xlane.f32.xlu0 %v1536
        %v1538 = vpop.xlane.xlu0 %1537
        %v1539 = vsel %vm1231, %v1381, -inf
        %1540 = vmax.xlane.f32.xlu0 %v1539
        %v1541 = vpop.xlane.xlu0 %1540
        %v1542 = vsel %vm1231, %v1457, -inf
        %1543 = vmax.xlane.f32.xlu0 %v1542
        %v1544 = vpop.xlane.xlu0 %1543
        %v1545 = vsel %vm1231, %v1533, -inf
        %1546 = vmax.xlane.f32.xlu0 %v1545
        %v1547 = vpop.xlane.xlu0 %1546
        %v1548 = vsub.f32 %v1305, %v1538
        %v1549 = vsub.f32 %v1381, %v1541
        %v1550 = vsub.f32 %v1457, %v1544
        %v1551 = vsub.f32 %v1533, %v1547
        %v1552 = vmul.f32 %v1548, 1.442695
        %v1553 = vpow.pop %v1552
        %v1554 = vmul.f32 %v1549, 1.442695
        %v1555 = vpow.pop %v1554
        %v1556 = vmul.f32 %v1550, 1.442695
        %v1557 = vpow.pop %v1556
        %v1558 = vmul.f32 %v1551, 1.442695
        %v1559 = vpow.pop %v1558
        %v1560 = vsel %vm1231, %v1553, 0.0
        %1561 = vadd.xlane.f32.xlu0 %v1560
        %v1562 = vpop.xlane.xlu0 %1561
        %v1563 = vsel %vm1231, %v1555, 0.0
        %1564 = vadd.xlane.f32.xlu0 %v1563
        %v1565 = vpop.xlane.xlu0 %1564
        %v1566 = vsel %vm1231, %v1557, 0.0
        %1567 = vadd.xlane.f32.xlu0 %v1566
        %v1568 = vpop.xlane.xlu0 %1567
        %v1569 = vsel %vm1231, %v1559, 0.0
        %1570 = vadd.xlane.f32.xlu0 %v1569
        %v1571 = vpop.xlane.xlu0 %1570
        %v1572 = vrcp.pop %v1562
        %v1573 = vrcp.pop %v1565
        %v1574 = vrcp.pop %v1568
        %v1575 = vrcp.pop %v1571
        %v1576 = vmul.f32 %v1562, %v1572
        %v1577 = vmul.f32 %v1565, %v1573
        %v1578 = vmul.f32 %v1568, %v1574
        %v1579 = vmul.f32 %v1571, %v1575
        %v1580 = vsub.f32 2.0, %v1576
        %v1581 = vsub.f32 2.0, %v1577
        %v1582 = vsub.f32 2.0, %v1578
        %v1583 = vsub.f32 2.0, %v1579
        %v1584 = vmul.f32 %v1572, %v1580
        %v1585 = vmul.f32 %v1573, %v1581
        %v1586 = vmul.f32 %v1574, %v1582
        %v1587 = vmul.f32 %v1575, %v1583
        %v1588 = vmul.f32 %v1553, %v1584
        %v1589 = vmul.f32 %v1555, %v1585
        %v1590 = vmul.f32 %v1557, %v1586
        %v1591 = vmul.f32 %v1559, %v1587
        %v1593 = vsel %vm1231, %v1588, 0
        %1595 = vmatprep.subr.mxu0 0.0
        %1596 = vmatpush1.msra.mxu0 %v1227
        %1597 = vmatprep.subr.mxu0 0.0
        %1598 = vmatpush1.msra.mxu0 0.0
        %1599 = vmatprep.subr.mxu0 0.0
        %1600 = vmatpush1.msra.mxu0 0.0
        %1601 = vmatprep.subr.mxu0 0.0
        %1602 = vmatpush1.msra.mxu0 0.0
        %1603 = vmatprep.subr.mxu0 0.0
        %1604 = vmatpush1.msra.mxu0 0.0
        %1605 = vmatprep.subr.mxu0 0.0
        %1606 = vmatpush1.msra.mxu0 0.0
        %1607 = vmatprep.subr.mxu0 0.0
        %1608 = vmatpush1.msra.mxu0 0.0
        %1609 = vmatprep.subr.mxu0 0.0
        %1610 = vmatpush1.msra.mxu0 0.0
        %1611 = vmatprep.subr.mxu0 0.0
        %1612 = vmatpush1.msra.mxu0 0.0
        %1613 = vmatprep.subr.mxu0 0.0
        %1614 = vmatpush1.msra.mxu0 0.0
        %1615 = vmatprep.subr.mxu0 0.0
        %1616 = vmatpush1.msra.mxu0 0.0
        %1617 = vmatprep.subr.mxu0 0.0
        %1618 = vmatpush1.msra.mxu0 0.0
        %1619 = vmatprep.subr.mxu0 0.0
        %1620 = vmatpush1.msra.mxu0 0.0
        %1621 = vmatprep.subr.mxu0 0.0
        %1622 = vmatpush1.msra.mxu0 0.0
        %1623 = vmatprep.subr.mxu0 0.0
        %1624 = vmatpush1.msra.mxu0 0.0
        %1625 = vmatprep.subr.mxu0 0.0
        %1626 = vmatpush1.msra.mxu0 0.0
        %1627 = vmatprep.subr.mxu0 0.0
        %1628 = vmatpush1.msra.mxu0 0.0
        %1629 = vmatprep.subr.mxu0 0.0
        %1630 = vmatpush1.msra.mxu0 0.0
        %1631 = vmatprep.subr.mxu0 0.0
        %1632 = vmatpush1.msra.mxu0 0.0
        %1633 = vmatprep.subr.mxu0 0.0
        %1634 = vmatpush1.msra.mxu0 0.0
        %1635 = vmatprep.subr.mxu0 0.0
        %1636 = vmatpush1.msra.mxu0 0.0
        %1637 = vmatprep.subr.mxu0 0.0
        %1638 = vmatpush1.msra.mxu0 0.0
        %1639 = vmatprep.subr.mxu0 0.0
        %1640 = vmatpush1.msra.mxu0 0.0
        %1641 = vmatprep.subr.mxu0 0.0
        %1642 = vmatpush1.msra.mxu0 0.0
        %1643 = vmatprep.subr.mxu0 0.0
        %1644 = vmatpush1.msra.mxu0 0.0
        %1645 = vmatprep.subr.mxu0 0.0
        %1646 = vmatpush1.msra.mxu0 0.0
        %1647 = vmatprep.subr.mxu0 0.0
        %1648 = vmatpush1.msra.mxu0 0.0
        %1649 = vmatprep.subr.mxu0 0.0
        %1650 = vmatpush1.msra.mxu0 0.0
        %1651 = vmatprep.subr.mxu0 0.0
        %1652 = vmatpush1.msra.mxu0 0.0
        %1653 = vmatprep.subr.mxu0 0.0
        %1654 = vmatpush1.msra.mxu0 0.0
        %1655 = vmatprep.subr.mxu0 0.0
        %1656 = vmatpush1.msra.mxu0 0.0
        %1657 = vmatprep.subr.mxu0 0.0
        %1658 = vmatpush1.msra.mxu0 0.0
        %1659 = vmatprep.mubr.f32.mxu0 0.0
        %1660 = vmatmul.mubr.f32.gmra.mrb[0].mxu0 %v1593
        %v1661 = vpop.f32.mrb[0].mxu0
        %v1662 = vadd.f32 0.0, %v1661
        %v1663 = vpop.f32.mrb[0].mxu0
        %1664 = vdwg.mxu0
        %v1666 = vsel %vm1231, %v1589, 0
        %1668 = vmatprep.subr.mxu0 0.0
        %1669 = vmatpush1.msra.mxu0 %v1228
        %1670 = vmatprep.subr.mxu0 0.0
        %1671 = vmatpush1.msra.mxu0 0.0
        %1672 = vmatprep.subr.mxu0 0.0
        %1673 = vmatpush1.msra.mxu0 0.0
        %1674 = vmatprep.subr.mxu0 0.0
        %1675 = vmatpush1.msra.mxu0 0.0
        %1676 = vmatprep.subr.mxu0 0.0
        %1677 = vmatpush1.msra.mxu0 0.0
        %1678 = vmatprep.subr.mxu0 0.0
        %1679 = vmatpush1.msra.mxu0 0.0
        %1680 = vmatprep.subr.mxu0 0.0
        %1681 = vmatpush1.msra.mxu0 0.0
        %1682 = vmatprep.subr.mxu0 0.0
        %1683 = vmatpush1.msra.mxu0 0.0
        %1684 = vmatprep.subr.mxu0 0.0
        %1685 = vmatpush1.msra.mxu0 0.0
        %1686 = vmatprep.subr.mxu0 0.0
        %1687 = vmatpush1.msra.mxu0 0.0
        %1688 = vmatprep.subr.mxu0 0.0
        %1689 = vmatpush1.msra.mxu0 0.0
        %1690 = vmatprep.subr.mxu0 0.0
        %1691 = vmatpush1.msra.mxu0 0.0
        %1692 = vmatprep.subr.mxu0 0.0
        %1693 = vmatpush1.msra.mxu0 0.0
        %1694 = vmatprep.subr.mxu0 0.0
        %1695 = vmatpush1.msra.mxu0 0.0
        %1696 = vmatprep.subr.mxu0 0.0
        %1697 = vmatpush1.msra.mxu0 0.0
        %1698 = vmatprep.subr.mxu0 0.0
        %1699 = vmatpush1.msra.mxu0 0.0
        %1700 = vmatprep.subr.mxu0 0.0
        %1701 = vmatpush1.msra.mxu0 0.0
        %1702 = vmatprep.subr.mxu0 0.0
        %1703 = vmatpush1.msra.mxu0 0.0
        %1704 = vmatprep.subr.mxu0 0.0
        %1705 = vmatpush1.msra.mxu0 0.0
        %1706 = vmatprep.subr.mxu0 0.0
        %1707 = vmatpush1.msra.mxu0 0.0
        %1708 = vmatprep.subr.mxu0 0.0
        %1709 = vmatpush1.msra.mxu0 0.0
        %1710 = vmatprep.subr.mxu0 0.0
        %1711 = vmatpush1.msra.mxu0 0.0
        %1712 = vmatprep.subr.mxu0 0.0
        %1713 = vmatpush1.msra.mxu0 0.0
        %1714 = vmatprep.subr.mxu0 0.0
        %1715 = vmatpush1.msra.mxu0 0.0
        %1716 = vmatprep.subr.mxu0 0.0
        %1717 = vmatpush1.msra.mxu0 0.0
        %1718 = vmatprep.subr.mxu0 0.0
        %1719 = vmatpush1.msra.mxu0 0.0
        %1720 = vmatprep.subr.mxu0 0.0
        %1721 = vmatpush1.msra.mxu0 0.0
        %1722 = vmatprep.subr.mxu0 0.0
        %1723 = vmatpush1.msra.mxu0 0.0
        %1724 = vmatprep.subr.mxu0 0.0
        %1725 = vmatpush1.msra.mxu0 0.0
        %1726 = vmatprep.subr.mxu0 0.0
        %1727 = vmatpush1.msra.mxu0 0.0
        %1728 = vmatprep.subr.mxu0 0.0
        %1729 = vmatpush1.msra.mxu0 0.0
        %1730 = vmatprep.subr.mxu0 0.0
        %1731 = vmatpush1.msra.mxu0 0.0
        %1732 = vmatprep.mubr.f32.mxu0 0.0
        %1733 = vmatmul.mubr.f32.gmra.mrb[0].mxu0 %v1666
        %v1734 = vpop.f32.mrb[0].mxu0
        %v1735 = vadd.f32 0.0, %v1734
        %v1736 = vpop.f32.mrb[0].mxu0
        %1737 = vdwg.mxu0
        %v1739 = vsel %vm1231, %v1590, 0
        %1741 = vmatprep.subr.mxu0 0.0
        %1742 = vmatpush1.msra.mxu0 %v1229
        %1743 = vmatprep.subr.mxu0 0.0
        %1744 = vmatpush1.msra.mxu0 0.0
        %1745 = vmatprep.subr.mxu0 0.0
        %1746 = vmatpush1.msra.mxu0 0.0
        %1747 = vmatprep.subr.mxu0 0.0
        %1748 = vmatpush1.msra.mxu0 0.0
        %1749 = vmatprep.subr.mxu0 0.0
        %1750 = vmatpush1.msra.mxu0 0.0
        %1751 = vmatprep.subr.mxu0 0.0
        %1752 = vmatpush1.msra.mxu0 0.0
        %1753 = vmatprep.subr.mxu0 0.0
        %1754 = vmatpush1.msra.mxu0 0.0
        %1755 = vmatprep.subr.mxu0 0.0
        %1756 = vmatpush1.msra.mxu0 0.0
        %1757 = vmatprep.subr.mxu0 0.0
        %1758 = vmatpush1.msra.mxu0 0.0
        %1759 = vmatprep.subr.mxu0 0.0
        %1760 = vmatpush1.msra.mxu0 0.0
        %1761 = vmatprep.subr.mxu0 0.0
        %1762 = vmatpush1.msra.mxu0 0.0
        %1763 = vmatprep.subr.mxu0 0.0
        %1764 = vmatpush1.msra.mxu0 0.0
        %1765 = vmatprep.subr.mxu0 0.0
        %1766 = vmatpush1.msra.mxu0 0.0
        %1767 = vmatprep.subr.mxu0 0.0
        %1768 = vmatpush1.msra.mxu0 0.0
        %1769 = vmatprep.subr.mxu0 0.0
        %1770 = vmatpush1.msra.mxu0 0.0
        %1771 = vmatprep.subr.mxu0 0.0
        %1772 = vmatpush1.msra.mxu0 0.0
        %1773 = vmatprep.subr.mxu0 0.0
        %1774 = vmatpush1.msra.mxu0 0.0
        %1775 = vmatprep.subr.mxu0 0.0
        %1776 = vmatpush1.msra.mxu0 0.0
        %1777 = vmatprep.subr.mxu0 0.0
        %1778 = vmatpush1.msra.mxu0 0.0
        %1779 = vmatprep.subr.mxu0 0.0
        %1780 = vmatpush1.msra.mxu0 0.0
        %1781 = vmatprep.subr.mxu0 0.0
        %1782 = vmatpush1.msra.mxu0 0.0
        %1783 = vmatprep.subr.mxu0 0.0
        %1784 = vmatpush1.msra.mxu0 0.0
        %1785 = vmatprep.subr.mxu0 0.0
        %1786 = vmatpush1.msra.mxu0 0.0
        %1787 = vmatprep.subr.mxu0 0.0
        %1788 = vmatpush1.msra.mxu0 0.0
        %1789 = vmatprep.subr.mxu0 0.0
        %1790 = vmatpush1.msra.mxu0 0.0
        %1791 = vmatprep.subr.mxu0 0.0
        %1792 = vmatpush1.msra.mxu0 0.0
        %1793 = vmatprep.subr.mxu0 0.0
        %1794 = vmatpush1.msra.mxu0 0.0
        %1795 = vmatprep.subr.mxu0 0.0
        %1796 = vmatpush1.msra.mxu0 0.0
        %1797 = vmatprep.subr.mxu0 0.0
        %1798 = vmatpush1.msra.mxu0 0.0
        %1799 = vmatprep.subr.mxu0 0.0
        %1800 = vmatpush1.msra.mxu0 0.0
        %1801 = vmatprep.subr.mxu0 0.0
        %1802 = vmatpush1.msra.mxu0 0.0
        %1803 = vmatprep.subr.mxu0 0.0
        %1804 = vmatpush1.msra.mxu0 0.0
        %1805 = vmatprep.mubr.f32.mxu0 0.0
        %1806 = vmatmul.mubr.f32.gmra.mrb[0].mxu0 %v1739
        %v1807 = vpop.f32.mrb[0].mxu0
        %v1808 = vadd.f32 0.0, %v1807
        %v1809 = vpop.f32.mrb[0].mxu0
        %1810 = vdwg.mxu0
        %v1812 = vsel %vm1231, %v1591, 0
        %1814 = vmatprep.subr.mxu0 0.0
        %1815 = vmatpush1.msra.mxu0 %v1230
        %1816 = vmatprep.subr.mxu0 0.0
        %1817 = vmatpush1.msra.mxu0 0.0
        %1818 = vmatprep.subr.mxu0 0.0
        %1819 = vmatpush1.msra.mxu0 0.0
        %1820 = vmatprep.subr.mxu0 0.0
        %1821 = vmatpush1.msra.mxu0 0.0
        %1822 = vmatprep.subr.mxu0 0.0
        %1823 = vmatpush1.msra.mxu0 0.0
        %1824 = vmatprep.subr.mxu0 0.0
        %1825 = vmatpush1.msra.mxu0 0.0
        %1826 = vmatprep.subr.mxu0 0.0
        %1827 = vmatpush1.msra.mxu0 0.0
        %1828 = vmatprep.subr.mxu0 0.0
        %1829 = vmatpush1.msra.mxu0 0.0
        %1830 = vmatprep.subr.mxu0 0.0
        %1831 = vmatpush1.msra.mxu0 0.0
        %1832 = vmatprep.subr.mxu0 0.0
        %1833 = vmatpush1.msra.mxu0 0.0
        %1834 = vmatprep.subr.mxu0 0.0
        %1835 = vmatpush1.msra.mxu0 0.0
        %1836 = vmatprep.subr.mxu0 0.0
        %1837 = vmatpush1.msra.mxu0 0.0
        %1838 = vmatprep.subr.mxu0 0.0
        %1839 = vmatpush1.msra.mxu0 0.0
        %1840 = vmatprep.subr.mxu0 0.0
        %1841 = vmatpush1.msra.mxu0 0.0
        %1842 = vmatprep.subr.mxu0 0.0
        %1843 = vmatpush1.msra.mxu0 0.0
        %1844 = vmatprep.subr.mxu0 0.0
        %1845 = vmatpush1.msra.mxu0 0.0
        %1846 = vmatprep.subr.mxu0 0.0
        %1847 = vmatpush1.msra.mxu0 0.0
        %1848 = vmatprep.subr.mxu0 0.0
        %1849 = vmatpush1.msra.mxu0 0.0
        %1850 = vmatprep.subr.mxu0 0.0
        %1851 = vmatpush1.msra.mxu0 0.0
        %1852 = vmatprep.subr.mxu0 0.0
        %1853 = vmatpush1.msra.mxu0 0.0
        %1854 = vmatprep.subr.mxu0 0.0
        %1855 = vmatpush1.msra.mxu0 0.0
        %1856 = vmatprep.subr.mxu0 0.0
        %1857 = vmatpush1.msra.mxu0 0.0
        %1858 = vmatprep.subr.mxu0 0.0
        %1859 = vmatpush1.msra.mxu0 0.0
        %1860 = vmatprep.subr.mxu0 0.0
        %1861 = vmatpush1.msra.mxu0 0.0
        %1862 = vmatprep.subr.mxu0 0.0
        %1863 = vmatpush1.msra.mxu0 0.0
        %1864 = vmatprep.subr.mxu0 0.0
        %1865 = vmatpush1.msra.mxu0 0.0
        %1866 = vmatprep.subr.mxu0 0.0
        %1867 = vmatpush1.msra.mxu0 0.0
        %1868 = vmatprep.subr.mxu0 0.0
        %1869 = vmatpush1.msra.mxu0 0.0
        %1870 = vmatprep.subr.mxu0 0.0
        %1871 = vmatpush1.msra.mxu0 0.0
        %1872 = vmatprep.subr.mxu0 0.0
        %1873 = vmatpush1.msra.mxu0 0.0
        %1874 = vmatprep.subr.mxu0 0.0
        %1875 = vmatpush1.msra.mxu0 0.0
        %1876 = vmatprep.subr.mxu0 0.0
        %1877 = vmatpush1.msra.mxu0 0.0
        %1878 = vmatprep.mubr.f32.mxu0 0.0
        %1879 = vmatmul.mubr.f32.gmra.mrb[0].mxu0 %v1812
        %v1880 = vpop.f32.mrb[0].mxu0
        %v1881 = vadd.f32 0.0, %v1880
        %v1882 = vpop.f32.mrb[0].mxu0
        %1883 = vdwg.mxu0
        %v1884 = vcombine.low %v1662, %v1808
        %v1885 = vcombine.high %v1662, %v1808
        %v1887 = vunpack.c.l.s4 1983009808
        %v1888 = vunpack.c.0.s8 %v1887
        %v1889 = vlaneseq
        %v1890 = vshrl.u32 %v1889, 7
        %v1891 = vsub.s32 %v1888, %v1890
        %v1892 = vrot.slane %v1884, %v1891
        %v1894 = vunpack.c.l.s4 1983009808
        %v1895 = vunpack.c.0.s8 %v1894
        %v1896 = vlaneseq
        %v1897 = vshrl.u32 %v1896, 7
        %v1898 = vsub.s32 %v1895, %v1897
        %v1899 = vrot.slane %v1885, %v1898
        %v1900 = vcombine.low %v1735, %v1881
        %v1901 = vcombine.high %v1735, %v1881
        %v1903 = vunpack.c.l.s4 1983009808
        %v1904 = vunpack.c.0.s8 %v1903
        %v1905 = vlaneseq
        %v1906 = vshrl.u32 %v1905, 7
        %v1907 = vsub.s32 %v1904, %v1906
        %v1908 = vrot.slane %v1900, %v1907
        %v1910 = vunpack.c.l.s4 1983009808
        %v1911 = vunpack.c.0.s8 %v1910
        %v1912 = vlaneseq
        %v1913 = vshrl.u32 %v1912, 7
        %v1914 = vsub.s32 %v1911, %v1913
        %v1915 = vrot.slane %v1901, %v1914
        %v1916 = vcombine.low %v1892, %v1908
        %v1917 = vcombine.high %v1892, %v1908
        %v1919 = vunpack.c.l.s4 1934713408
        %v1920 = vunpack.c.0.s8 %v1919
        %v1921 = vlaneseq
        %v1922 = vshrl.u32 %v1921, 7
        %v1923 = vsub.s32 %v1920, %v1922
        %v1924 = vrot.slane %v1916, %v1923
        %v1926 = vunpack.c.l.s4 1934713408
        %v1927 = vunpack.c.0.s8 %v1926
        %v1928 = vlaneseq
        %v1929 = vshrl.u32 %v1928, 7
        %v1930 = vsub.s32 %v1927, %v1929
        %v1931 = vrot.slane %v1917, %v1930
        %v1932 = vcombine.low %v1899, %v1915
        %v1933 = vcombine.high %v1899, %v1915
        %v1935 = vunpack.c.l.s4 1934713408
        %v1936 = vunpack.c.0.s8 %v1935
        %v1937 = vlaneseq
        %v1938 = vshrl.u32 %v1937, 7
        %v1939 = vsub.s32 %v1936, %v1938
        %v1940 = vrot.slane %v1932, %v1939
        %v1942 = vunpack.c.l.s4 1934713408
        %v1943 = vunpack.c.0.s8 %v1942
        %v1944 = vlaneseq
        %v1945 = vshrl.u32 %v1944, 7
        %v1946 = vsub.s32 %v1943, %v1945
        %v1947 = vrot.slane %v1933, %v1946
        %v1948 = vcombine.high %v1924, 0.0
        %v1949 = vcombine.high %v1931, 0.0
        %v1950 = vcombine.high %v1940, 0.0
        %v1951 = vcombine.high %v1947, 0.0
        %v1952 = vcombine.low %v1924, %v1931
        %v1954 = vunpack.c.l.s4 1983009808
        %v1955 = vunpack.c.0.s8 %v1954
        %v1956 = vlaneseq
        %v1957 = vshrl.u32 %v1956, 7
        %v1958 = vsub.s32 %v1955, %v1957
        %v1959 = vrot.slane %v1952, %v1958
        %v1960 = vcombine.low %v1948, %v1949
        %v1962 = vunpack.c.l.s4 1983009808
        %v1963 = vunpack.c.0.s8 %v1962
        %v1964 = vlaneseq
        %v1965 = vshrl.u32 %v1964, 7
        %v1966 = vsub.s32 %v1963, %v1965
        %v1967 = vrot.slane %v1960, %v1966
        %v1968 = vcombine.low %v1940, %v1947
        %v1970 = vunpack.c.l.s4 1983009808
        %v1971 = vunpack.c.0.s8 %v1970
        %v1972 = vlaneseq
        %v1973 = vshrl.u32 %v1972, 7
        %v1974 = vsub.s32 %v1971, %v1973
        %v1975 = vrot.slane %v1968, %v1974
        %v1976 = vcombine.low %v1950, %v1951
        %v1978 = vunpack.c.l.s4 1983009808
        %v1979 = vunpack.c.0.s8 %v1978
        %v1980 = vlaneseq
        %v1981 = vshrl.u32 %v1980, 7
        %v1982 = vsub.s32 %v1979, %v1981
        %v1983 = vrot.slane %v1976, %v1982
        %v1984 = vcombine.low %v1959, %v1967
        %v1985 = vcombine.high %v1959, %v1967
        %v1987 = vunpack.c.l.s4 1934713408
        %v1988 = vunpack.c.0.s8 %v1987
        %v1989 = vlaneseq
        %v1990 = vshrl.u32 %v1989, 7
        %v1991 = vsub.s32 %v1988, %v1990
        %v1992 = vrot.slane %v1984, %v1991
        %v1994 = vunpack.c.l.s4 1934713408
        %v1995 = vunpack.c.0.s8 %v1994
        %v1996 = vlaneseq
        %v1997 = vshrl.u32 %v1996, 7
        %v1998 = vsub.s32 %v1995, %v1997
        %v1999 = vrot.slane %v1985, %v1998
        %v2000 = vcombine.low %v1975, %v1983
        %v2001 = vcombine.high %v1975, %v1983
        %v2003 = vunpack.c.l.s4 1934713408
        %v2004 = vunpack.c.0.s8 %v2003
        %v2005 = vlaneseq
        %v2006 = vshrl.u32 %v2005, 7
        %v2007 = vsub.s32 %v2004, %v2006
        %v2008 = vrot.slane %v2000, %v2007
        %v2010 = vunpack.c.l.s4 1934713408
        %v2011 = vunpack.c.0.s8 %v2010
        %v2012 = vlaneseq
        %v2013 = vshrl.u32 %v2012, 7
        %v2014 = vsub.s32 %v2011, %v2013
        %v2015 = vrot.slane %v2001, %v2014
        %v2016 = vcombine.low %v1992, %v2008
        %v2017 = vcombine.high %v1992, %v2008
        %v2018 = vcombine.low %v1999, %v2015
        %v2019 = vcombine.high %v1999, %v2015
        %2021 = vrot.lane.b32.xlu0 %v2017, 8
        %v2022 = vpop.permute.xlu0 %2021
        %2025 = vrot.lane.b32.xlu0 %v2018, 16
        %v2026 = vpop.permute.xlu0 %2025
        %2029 = vrot.lane.b32.xlu0 %v2019, 24
        %v2030 = vpop.permute.xlu0 %2029
        %v2032 = vsel %vm1231, %v2016, %v2022
        %vm2033 = vcmask 130048
        %v2034 = vsel %vm2033, %v2032, %v2026
        %vm2035 = vcmask 195584
        %v2036 = vsel %vm2035, %v2034, %v2030
        %v2037 = vld [vmem:[%s647] sm:$0xff]
        %v2038 = vld [vmem:[%s647 + $0x8] sm:$0xff]
        %v2039 = vld [vmem:[%s647 + $0x10] sm:$0xff]
        %v2040 = vld [vmem:[%s647 + $0x18] sm:$0xff]
        %v2042 = vsel %vm683, %v2036, 0
        %2044 = vmatprep.subr.mxu0 0.0
        %2045 = vmatpush1.msra.mxu0 %v2037
        %2046 = vmatprep.subr.mxu0 0.0
        %2047 = vmatpush1.msra.mxu0 %v2038
        %2048 = vmatprep.subr.mxu0 0.0
        %2049 = vmatpush1.msra.mxu0 %v2039
        %2050 = vmatprep.subr.mxu0 0.0
        %2051 = vmatpush1.msra.mxu0 %v2040
        %2052 = vmatprep.subr.mxu0 0.0
        %2053 = vmatpush1.msra.mxu0 0.0
        %2054 = vmatprep.subr.mxu0 0.0
        %2055 = vmatpush1.msra.mxu0 0.0
        %2056 = vmatprep.subr.mxu0 0.0
        %2057 = vmatpush1.msra.mxu0 0.0
        %2058 = vmatprep.subr.mxu0 0.0
        %2059 = vmatpush1.msra.mxu0 0.0
        %2060 = vmatprep.subr.mxu0 0.0
        %2061 = vmatpush1.msra.mxu0 0.0
        %2062 = vmatprep.subr.mxu0 0.0
        %2063 = vmatpush1.msra.mxu0 0.0
        %2064 = vmatprep.subr.mxu0 0.0
        %2065 = vmatpush1.msra.mxu0 0.0
        %2066 = vmatprep.subr.mxu0 0.0
        %2067 = vmatpush1.msra.mxu0 0.0
        %2068 = vmatprep.subr.mxu0 0.0
        %2069 = vmatpush1.msra.mxu0 0.0
        %2070 = vmatprep.subr.mxu0 0.0
        %2071 = vmatpush1.msra.mxu0 0.0
        %2072 = vmatprep.subr.mxu0 0.0
        %2073 = vmatpush1.msra.mxu0 0.0
        %2074 = vmatprep.subr.mxu0 0.0
        %2075 = vmatpush1.msra.mxu0 0.0
        %2076 = vmatprep.subr.mxu0 0.0
        %2077 = vmatpush1.msra.mxu0 0.0
        %2078 = vmatprep.subr.mxu0 0.0
        %2079 = vmatpush1.msra.mxu0 0.0
        %2080 = vmatprep.subr.mxu0 0.0
        %2081 = vmatpush1.msra.mxu0 0.0
        %2082 = vmatprep.subr.mxu0 0.0
        %2083 = vmatpush1.msra.mxu0 0.0
        %2084 = vmatprep.subr.mxu0 0.0
        %2085 = vmatpush1.msra.mxu0 0.0
        %2086 = vmatprep.subr.mxu0 0.0
        %2087 = vmatpush1.msra.mxu0 0.0
        %2088 = vmatprep.subr.mxu0 0.0
        %2089 = vmatpush1.msra.mxu0 0.0
        %2090 = vmatprep.subr.mxu0 0.0
        %2091 = vmatpush1.msra.mxu0 0.0
        %2092 = vmatprep.subr.mxu0 0.0
        %2093 = vmatpush1.msra.mxu0 0.0
        %2094 = vmatprep.subr.mxu0 0.0
        %2095 = vmatpush1.msra.mxu0 0.0
        %2096 = vmatprep.subr.mxu0 0.0
        %2097 = vmatpush1.msra.mxu0 0.0
        %2098 = vmatprep.subr.mxu0 0.0
        %2099 = vmatpush1.msra.mxu0 0.0
        %2100 = vmatprep.subr.mxu0 0.0
        %2101 = vmatpush1.msra.mxu0 0.0
        %2102 = vmatprep.subr.mxu0 0.0
        %2103 = vmatpush1.msra.mxu0 0.0
        %2104 = vmatprep.subr.mxu0 0.0
        %2105 = vmatpush1.msra.mxu0 0.0
        %2106 = vmatprep.subr.mxu0 0.0
        %2107 = vmatpush1.msra.mxu0 0.0
        %2108 = vmatprep.mubr.f32.mxu0 0.0
        %2109 = vmatmul.mubr.f32.gmra.mrb[0].mxu0 %v2042
        %v2110 = vpop.f32.mrb[0].mxu0
        %v2111 = vadd.f32 0.0, %v2110
        %v2112 = vpop.f32.mrb[0].mxu0
        %2113 = vdwg.mxu0
        %v2114 = vadd.f32 %v680, %v2111
        %v2115 = vld [vmem:[%s650] sm:$0x1]
        %v2117 = vlaneseq
        %v2118 = vshrl.u32 %v2117, 7
        %v2119 = vsub.s32 0, %v2118
        %v2120 = vrot.slane %v2115, %v2119
        %v2122 = vadd.f32 %v2114, %v2120
        %v2123 = vld [vmem:[%s653] sm:$0x1]
        %v2124 = vld [vmem:[%s656] sm:$0x1]
        %v2125 = vsel %vm683, %v2122, 0.0
        %2126 = vadd.xlane.f32.xlu0 %v2125
        %v2127 = vpop.xlane.xlu0 %2126
        %v2128 = vmul.f32 %v2127, %v687
        %v2129 = vsub.f32 %v2122, %v2128
        %v2130 = vmul.f32 %v2129, %v2129
        %v2131 = vsel %vm683, %v2130, 0.0
        %2132 = vadd.xlane.f32.xlu0 %v2131
        %v2133 = vpop.xlane.xlu0 %2132
        %v2134 = vmul.f32 %v2133, %v687
        %v2135 = vadd.f32 %v2134, 1e-05
        %v2136 = vrsqrt.pop %v2135
        %v2137 = vmul.f32 %v2129, %v2136
        %v2139 = vlaneseq
        %v2140 = vshrl.u32 %v2139, 7
        %v2141 = vsub.s32 0, %v2140
        %v2142 = vrot.slane %v2123, %v2141
        %v2144 = vmul.f32 %v2137, %v2142
        %v2146 = vlaneseq
        %v2147 = vshrl.u32 %v2146, 7
        %v2148 = vsub.s32 0, %v2147
        %v2149 = vrot.slane %v2124, %v2148
        %v2151 = vadd.f32 %v2144, %v2149
        %v2152 = vld [vmem:[%s661] sm:$0xff]
        %v2153 = vld [vmem:[%s661 + $0x8] sm:$0xff]
        %v2154 = vld [vmem:[%s661 + $0x10] sm:$0xff]
        %v2155 = vld [vmem:[%s661 + $0x18] sm:$0xff]
        %v2156 = vld [vmem:[%s664] sm:$0x1]
        %v2158 = vlaneseq
        %v2159 = vshrl.u32 %v2158, 7
        %v2160 = vsub.s32 0, %v2159
        %v2161 = vrot.slane %v2156, %v2160
        %v2164 = vsel %vm683, %v2151, 0
        %2166 = vmatprep.subr.mxu0 0.0
        %2167 = vmatpush1.msra.mxu0 %v2152
        %2168 = vmatprep.subr.mxu0 0.0
        %2169 = vmatpush1.msra.mxu0 %v2153
        %2170 = vmatprep.subr.mxu0 0.0
        %2171 = vmatpush1.msra.mxu0 %v2154
        %2172 = vmatprep.subr.mxu0 0.0
        %2173 = vmatpush1.msra.mxu0 %v2155
        %2174 = vmatprep.subr.mxu0 0.0
        %2175 = vmatpush1.msra.mxu0 0.0
        %2176 = vmatprep.subr.mxu0 0.0
        %2177 = vmatpush1.msra.mxu0 0.0
        %2178 = vmatprep.subr.mxu0 0.0
        %2179 = vmatpush1.msra.mxu0 0.0
        %2180 = vmatprep.subr.mxu0 0.0
        %2181 = vmatpush1.msra.mxu0 0.0
        %2182 = vmatprep.subr.mxu0 0.0
        %2183 = vmatpush1.msra.mxu0 0.0
        %2184 = vmatprep.subr.mxu0 0.0
        %2185 = vmatpush1.msra.mxu0 0.0
        %2186 = vmatprep.subr.mxu0 0.0
        %2187 = vmatpush1.msra.mxu0 0.0
        %2188 = vmatprep.subr.mxu0 0.0
        %2189 = vmatpush1.msra.mxu0 0.0
        %2190 = vmatprep.subr.mxu0 0.0
        %2191 = vmatpush1.msra.mxu0 0.0
        %2192 = vmatprep.subr.mxu0 0.0
        %2193 = vmatpush1.msra.mxu0 0.0
        %2194 = vmatprep.subr.mxu0 0.0
        %2195 = vmatpush1.msra.mxu0 0.0
        %2196 = vmatprep.subr.mxu0 0.0
        %2197 = vmatpush1.msra.mxu0 0.0
        %2198 = vmatprep.subr.mxu0 0.0
        %2199 = vmatpush1.msra.mxu0 0.0
        %2200 = vmatprep.subr.mxu0 0.0
        %2201 = vmatpush1.msra.mxu0 0.0
        %2202 = vmatprep.subr.mxu0 0.0
        %2203 = vmatpush1.msra.mxu0 0.0
        %2204 = vmatprep.subr.mxu0 0.0
        %2205 = vmatpush1.msra.mxu0 0.0
        %2206 = vmatprep.subr.mxu0 0.0
        %2207 = vmatpush1.msra.mxu0 0.0
        %2208 = vmatprep.subr.mxu0 0.0
        %2209 = vmatpush1.msra.mxu0 0.0
        %2210 = vmatprep.subr.mxu0 0.0
        %2211 = vmatpush1.msra.mxu0 0.0
        %2212 = vmatprep.subr.mxu0 0.0
        %2213 = vmatpush1.msra.mxu0 0.0
        %2214 = vmatprep.subr.mxu0 0.0
        %2215 = vmatpush1.msra.mxu0 0.0
        %2216 = vmatprep.subr.mxu0 0.0
        %2217 = vmatpush1.msra.mxu0 0.0
        %2218 = vmatprep.subr.mxu0 0.0
        %2219 = vmatpush1.msra.mxu0 0.0
        %2220 = vmatprep.subr.mxu0 0.0
        %2221 = vmatpush1.msra.mxu0 0.0
        %2222 = vmatprep.subr.mxu0 0.0
        %2223 = vmatpush1.msra.mxu0 0.0
        %2224 = vmatprep.subr.mxu0 0.0
        %2225 = vmatpush1.msra.mxu0 0.0
        %2226 = vmatprep.subr.mxu0 0.0
        %2227 = vmatpush1.msra.mxu0 0.0
        %2228 = vmatprep.subr.mxu0 0.0
        %2229 = vmatpush1.msra.mxu0 0.0
        %2230 = vmatprep.mubr.f32.mxu0 0.0
        %2231 = vmatmul.mubr.f32.gmra.mrb[0].mxu0 %v2164
        %v2232 = vpop.f32.mrb[0].mxu0
        %v2233 = vadd.f32 %v2161, %v2232
        %v2234 = vpop.f32.mrb[0].mxu0
        %2235 = vdwg.mxu0
        %v2236 = vmax.f32 %v2233, 0.0
        %v2237 = vld [vmem:[%s669] sm:$0xff]
        %v2238 = vld [vmem:[%s669 + $0x8] sm:$0xff]
        %v2239 = vld [vmem:[%s669 + $0x10] sm:$0xff]
        %v2240 = vld [vmem:[%s669 + $0x18] sm:$0xff]
        %v2241 = vld [vmem:[%s669 + $0x20] sm:$0xff]
        %v2242 = vld [vmem:[%s669 + $0x28] sm:$0xff]
        %v2243 = vld [vmem:[%s669 + $0x30] sm:$0xff]
        %v2244 = vld [vmem:[%s669 + $0x38] sm:$0xff]
        %v2245 = vld [vmem:[%s672] sm:$0x1]
        %v2247 = vlaneseq
        %v2248 = vshrl.u32 %v2247, 7
        %v2249 = vsub.s32 0, %v2248
        %v2250 = vrot.slane %v2245, %v2249
        %vm2252 = vcmask 523264
        %v2254 = vsel %vm2252, %v2236, 0
        %2256 = vmatprep.subr.mxu0 0.0
        %2257 = vmatpush1.msra.mxu0 %v2237
        %2258 = vmatprep.subr.mxu0 0.0
        %2259 = vmatpush1.msra.mxu0 %v2238
        %2260 = vmatprep.subr.mxu0 0.0
        %2261 = vmatpush1.msra.mxu0 %v2239
        %2262 = vmatprep.subr.mxu0 0.0
        %2263 = vmatpush1.msra.mxu0 %v2240
        %2264 = vmatprep.subr.mxu0 0.0
        %2265 = vmatpush1.msra.mxu0 %v2241
        %2266 = vmatprep.subr.mxu0 0.0
        %2267 = vmatpush1.msra.mxu0 %v2242
        %2268 = vmatprep.subr.mxu0 0.0
        %2269 = vmatpush1.msra.mxu0 %v2243
        %2270 = vmatprep.subr.mxu0 0.0
        %2271 = vmatpush1.msra.mxu0 %v2244
        %2272 = vmatprep.subr.mxu0 0.0
        %2273 = vmatpush1.msra.mxu0 0.0
        %2274 = vmatprep.subr.mxu0 0.0
        %2275 = vmatpush1.msra.mxu0 0.0
        %2276 = vmatprep.subr.mxu0 0.0
        %2277 = vmatpush1.msra.mxu0 0.0
        %2278 = vmatprep.subr.mxu0 0.0
        %2279 = vmatpush1.msra.mxu0 0.0
        %2280 = vmatprep.subr.mxu0 0.0
        %2281 = vmatpush1.msra.mxu0 0.0
        %2282 = vmatprep.subr.mxu0 0.0
        %2283 = vmatpush1.msra.mxu0 0.0
        %2284 = vmatprep.subr.mxu0 0.0
        %2285 = vmatpush1.msra.mxu0 0.0
        %2286 = vmatprep.subr.mxu0 0.0
        %2287 = vmatpush1.msra.mxu0 0.0
        %2288 = vmatprep.subr.mxu0 0.0
        %2289 = vmatpush1.msra.mxu0 0.0
        %2290 = vmatprep.subr.mxu0 0.0
        %2291 = vmatpush1.msra.mxu0 0.0
        %2292 = vmatprep.subr.mxu0 0.0
        %2293 = vmatpush1.msra.mxu0 0.0
        %2294 = vmatprep.subr.mxu0 0.0
        %2295 = vmatpush1.msra.mxu0 0.0
        %2296 = vmatprep.subr.mxu0 0.0
        %2297 = vmatpush1.msra.mxu0 0.0
        %2298 = vmatprep.subr.mxu0 0.0
        %2299 = vmatpush1.msra.mxu0 0.0
        %2300 = vmatprep.subr.mxu0 0.0
        %2301 = vmatpush1.msra.mxu0 0.0
        %2302 = vmatprep.subr.mxu0 0.0
        %2303 = vmatpush1.msra.mxu0 0.0
        %2304 = vmatprep.subr.mxu0 0.0
        %2305 = vmatpush1.msra.mxu0 0.0
        %2306 = vmatprep.subr.mxu0 0.0
        %2307 = vmatpush1.msra.mxu0 0.0
        %2308 = vmatprep.subr.mxu0 0.0
        %2309 = vmatpush1.msra.mxu0 0.0
        %2310 = vmatprep.subr.mxu0 0.0
        %2311 = vmatpush1.msra.mxu0 0.0
        %2312 = vmatprep.subr.mxu0 0.0
        %2313 = vmatpush1.msra.mxu0 0.0
        %2314 = vmatprep.subr.mxu0 0.0
        %2315 = vmatpush1.msra.mxu0 0.0
        %2316 = vmatprep.subr.mxu0 0.0
        %2317 = vmatpush1.msra.mxu0 0.0
        %2318 = vmatprep.subr.mxu0 0.0
        %2319 = vmatpush1.msra.mxu0 0.0
        %2320 = vmatprep.mubr.f32.mxu0 0.0
        %2321 = vmatmul.mubr.f32.gmra.mrb[0].mxu0 %v2254
        %v2322 = vpop.f32.mrb[0].mxu0
        %v2323 = vadd.f32 %v2250, %v2322
        %v2324 = vpop.f32.mrb[0].mxu0
        %2325 = vdwg.mxu0
        %v2326 = vadd.f32 %v2122, %v2323
        %2327 = vst.msk [vmem:[#allocation2] sm:$0xff] %vm683, %v2326
        %p2328 = scmp.eq.s32.totalorder %s36, 1
        // Predicated region
        $region85: #{tpu_custom_call.1} parent=75 // pred_check
          %p2329 = pneg %p2328
        $region86: #{tpu_custom_call.1} parent=75 // pred_check_branch
          %2331 = sbr.rel (%p2329) target = $region88
        $region87: #{tpu_custom_call.1} parent=75 // pred_region
          %v2332 = vld [vmem:[%s12] sm:$0x1]
          %v2333 = vld [vmem:[%s13] sm:$0x1]
          %v2334 = vsel %vm683, %v2326, 0.0
          %2335 = vadd.xlane.f32.xlu0 %v2334
          %v2336 = vpop.xlane.xlu0 %2335
          %v2337 = vmul.f32 %v2336, %v687
          %v2338 = vsub.f32 %v2326, %v2337
          %v2339 = vmul.f32 %v2338, %v2338
          %v2340 = vsel %vm683, %v2339, 0.0
          %2341 = vadd.xlane.f32.xlu0 %v2340
          %v2342 = vpop.xlane.xlu0 %2341
          %v2343 = vmul.f32 %v2342, %v687
          %v2344 = vadd.f32 %v2343, 1e-05
          %v2345 = vrsqrt.pop %v2344
          %v2346 = vmul.f32 %v2338, %v2345
          %v2348 = vlaneseq
          %v2349 = vshrl.u32 %v2348, 7
          %v2350 = vsub.s32 0, %v2349
          %v2351 = vrot.slane %v2332, %v2350
          %v2353 = vmul.f32 %v2346, %v2351
          %v2355 = vlaneseq
          %v2356 = vshrl.u32 %v2355, 7
          %v2357 = vsub.s32 0, %v2356
          %v2358 = vrot.slane %v2333, %v2357
          %v2360 = vadd.f32 %v2353, %v2358
          %2361 = vst.msk [vmem:[%s631] sm:$0xff] %vm683, %v2360
        $region88: #{tpu_custom_call.1} parent=75 // pred_fallthru
          _
        %s2362 = sand.u32 %s405, 1
        %s2363 = scalar_lea.sflag [#allocation5], %s2362
        %s2364 = sand.u32 %s405, 1
        %s2365 = smul.addr %s2364, 8
        %s2366 = scalar_lea.vmem [#allocation6], %s2365
        // Predicated region
        $region89: #{tpu_custom_call.1} parent=75 // pred_check
          %p2367 = pneg %p415
        $region90: #{tpu_custom_call.1} parent=75 // pred_check_branch
          %2369 = sbr.rel (%p2367) target = $region92
        $region91: #{tpu_custom_call.1} parent=75 // pred_region
          %s2371 = ssub.s32 128, 128
          %2372 = vsyncadd %s2363, %s2371
          %s2373 = smul.addr %s35, 128
          %s2374 = scalar_lea.hbm %s14, %s2373
          %s2376 = sshll.u32 %s2366, 4
          %s2377 = int_to_ptr.vmem [resolvable:$true] %s2376
          %2379 = dma.vmem_to_hbm [thread:$0]  %s2377, 128, %s2374, %s2363
        $region92: #{tpu_custom_call.1} parent=75 // pred_fallthru
          _
      $region76: #{tpu_custom_call.1} parent=5 // pred_fallthru
        _
      %p2380 = scmp.le.s32.totalorder 2, %s26
      // Predicated region
      $region93: #{tpu_custom_call.1} parent=5 // pred_check
        %p2381 = pneg %p2380
      $region94: #{tpu_custom_call.1} parent=5 // pred_check_branch
        %2383 = sbr.rel (%p2381) target = $region96
      $region95: #{tpu_custom_call.1} parent=5 // pred_region
        %s2384 = ssub.s32 %s26, 2
        // Predicated region
        $region97: #{tpu_custom_call.1} parent=95 // pred_check
          %p2385 = pneg %p421
        $region98: #{tpu_custom_call.1} parent=95 // pred_check_branch
          %2387 = sbr.rel (%p2385) target = $region100
        $region99: #{tpu_custom_call.1} parent=95 // pred_region
          %s2388 = sand.u32 %s406, 1
          %s2389 = scalar_lea.sflag [#allocation5], %s2388
          %s2390 = sand.u32 %s406, 1
          %s2391 = smul.addr %s2390, 8
          %s2392 = scalar_lea.vmem [#allocation6], %s2391
          %2393 = dma.done %s2389, 128
        $region100: #{tpu_custom_call.1} parent=95 // pred_fallthru
          _
      $region96: #{tpu_custom_call.1} parent=5 // pred_fallthru
        _
    $region6: #{tpu_custom_call.1} parent=1 // loop_footer
      %s30 = sadd.s32 1, %s26
    $region7: #{tpu_custom_call.1} parent=1 // loop_footer_branch
      %25 = sbr.rel target = $region3
    $region8: #{tpu_custom_call.1} parent=1 // loop_exit
      _
    %2394 = vsyncpa [#allocation4], 1
    %s2395 = scalar_lea.sflag [#allocation4], 1
    %2396 = vsyncpa %s2395, 1
    %2397 = vsyncpa [#allocation5], 1
    %s2398 = scalar_lea.sflag [#allocation5], 1
    %2399 = vsyncpa %s2398, 1

</llo_original>
